<compile_context>
chip_gen: v7x
topology: tpu7x:2x2x1
jax: 0.10.0
libtpu: 0.0.40
codegen_flags: <defaults>
</compile_context>

<pallas_src>
import jax
import jax.numpy as jnp
from jax.experimental import pallas as pl
from jax.experimental.pallas import tpu as pltpu

SCALE = 0.0472
ZERO_POINT = 64.0


def _qdq(x):
    """Emulates torch.quantize_per_tensor(..., quint8) followed by dequant."""
    q = jnp.clip(jnp.round(x / SCALE) + ZERO_POINT, 0.0, 255.0)
    return (q - ZERO_POINT) * SCALE


# ---------------------------------------------------------------------------
# Pallas kernels
# ---------------------------------------------------------------------------

def _relu_q_kernel(x_ref, o_ref):
    # fused fake-quant + ReLU on a lane-dense tile
    o_ref[...] = jnp.maximum(_qdq(x_ref[...]), 0.0)


def _avgpool_q_kernel(x_ref, o_ref):
    # x_ref: (1, H*W, C) -> o_ref: (1, 1, C)
    o_ref[...] = jnp.mean(_qdq(x_ref[...]), axis=1, keepdims=True)


def _fc_kernel(x_ref, w_ref, b_ref, o_ref):
    # x:(Mp,K) bf16, w:(K,Np) bf16, b:(1,Np) f32 -> o:(Mp,Np) f32
    o_ref[...] = jnp.dot(x_ref[...], w_ref[...],
                         preferred_element_type=jnp.float32) + b_ref[...]


def _make_conv_kernel(taps, mrows):
    """3x3 conv for one image: 9 shifted matmuls over a flattened padded slab.

    taps: static list of (phase_index, row_offset) per (kh, kw).
    """
    def kernel(x_ref, w_ref, b_ref, o_ref):
        # x_ref: (1, P, FLAT, Cin) bf16   w_ref: (9, Cin, Cout) bf16
        # b_ref: (1, Cout) f32            o_ref: (1, mrows, Cout) f32
        cout = w_ref.shape[-1]
        acc = jnp.zeros((mrows, cout), jnp.float32)
        for t, (p, off) in enumerate(taps):
            xt = x_ref[0, p, pl.ds(off, mrows), :]          # (mrows, Cin)
            acc = acc + jnp.dot(xt, w_ref[t],
                                preferred_element_type=jnp.float32)
        o_ref[0] = acc + b_ref[...]
    return kernel


# ---------------------------------------------------------------------------
# Op wrappers (jitted; layout prep fuses with the fake-quant / casts)
# ---------------------------------------------------------------------------

def relu_op(x):
    """Fused fake-quant + ReLU, tiled lane-dense (rows, 1024) blocks."""
    shape = x.shape
    flat = x.reshape(-1)
    n = flat.shape[0]
    lanes = 1024
    rows = -(-n // lanes)
    tr = 128 if rows >= 128 else max(8, ((rows + 7) // 8) * 8)
    grid_r = -(-rows // tr)
    rows_pad = grid_r * tr
    mat = jnp.pad(flat, (0, rows_pad * lanes - n)).reshape(rows_pad, lanes)
    out = pl.pallas_call(
        _relu_q_kernel,
        out_shape=jax.ShapeDtypeStruct((rows_pad, lanes), jnp.float32),
        grid=(grid_r,),
        in_specs=[pl.BlockSpec((tr, lanes), lambda i: (i, 0))],
        out_specs=pl.BlockSpec((tr, lanes), lambda i: (i, 0)),
        compiler_params=pltpu.CompilerParams(
            dimension_semantics=("parallel",)),
    )(mat)
    return out.reshape(-1)[:n].reshape(shape)


def avgpool_1x1_op(x_nchw):
    """AdaptiveAvgPool2d((1,1)) with fused fake-quant: NCHW -> (N, C, 1, 1)."""
    n, c, h, w = x_nchw.shape
    x = jnp.transpose(x_nchw, (0, 2, 3, 1)).reshape(n, h * w, c)
    out = pl.pallas_call(
        _avgpool_q_kernel,
        out_shape=jax.ShapeDtypeStruct((n, 1, c), jnp.float32),
        grid=(n,),
        in_specs=[pl.BlockSpec((1, h * w, c), lambda i: (i, 0, 0))],
        out_specs=pl.BlockSpec((1, 1, c), lambda i: (i, 0, 0)),
        compiler_params=pltpu.CompilerParams(
            dimension_semantics=("parallel",)),
    )(x)
    return out.reshape(n, c, 1, 1)


def linear_op(x, w_pad, b_pad, *, n_out):
    """Quantized Linear: fake-quant + bf16 MXU matmul + bias (fp32 out)."""
    m, k = x.shape
    mp = max(8, ((m + 7) // 8) * 8)
    xq = jnp.pad(_qdq(x).astype(jnp.bfloat16), ((0, mp - m), (0, 0)))
    np_ = w_pad.shape[1]
    out = pl.pallas_call(
        _fc_kernel,
        out_shape=jax.ShapeDtypeStruct((mp, np_), jnp.float32),
        grid=(1,),
        in_specs=[pl.BlockSpec((mp, k), lambda i: (0, 0)),
                  pl.BlockSpec((k, np_), lambda i: (0, 0)),
                  pl.BlockSpec((1, np_), lambda i: (0, 0))],
        out_specs=pl.BlockSpec((mp, np_), lambda i: (0, 0)),
    )(xq, w_pad, b_pad)
    return out[:m, :n_out]


def conv3x3_op(x_nchw, w9, b_row, *, stride):
    """Quantized 3x3 conv, pad=1, stride in {1,2}.  NCHW in/out.

    The padded NHWC image (or its 4 stride-phases for stride 2) is flattened to
    (FLAT, Cin); each tap (kh,kw) is a contiguous row-offset window of that slab,
    so the whole reduction runs inside one Pallas kernel with no im2col buffer.
    Extra "wrap" columns (PW vs OW per output row) are computed and discarded.
    """
    n, cin, h, w = x_nchw.shape
    cout = w9.shape[-1]
    x = _qdq(x_nchw).astype(jnp.bfloat16)
    x = jnp.transpose(x, (0, 2, 3, 1))                       # NHWC
    xp = jnp.pad(x, ((0, 0), (1, 1), (1, 1), (0, 0)))
    hp, wp = h + 2, w + 2
    if stride == 1:
        oh, ow = h, w
        ph_n, pw_n = hp, wp
        phases = [xp]
    else:  # stride == 2
        oh = (hp - 3) // 2 + 1
        ow = (wp - 3) // 2 + 1
        ph_n = (hp + 1) // 2
        pw_n = (wp + 1) // 2
        phases = []
        for pa in (0, 1):
            for pb in (0, 1):
                phx = xp[:, pa::2, pb::2, :]
                phx = jnp.pad(phx, ((0, 0), (0, ph_n - phx.shape[1]),
                                    (0, pw_n - phx.shape[2]), (0, 0)))
                phases.append(phx)
    nphase = len(phases)
    mrows = oh * pw_n
    taps = []
    for kh in range(3):
        for kw in range(3):
            if stride == 1:
                taps.append((0, kh * pw_n + kw))
            else:
                taps.append(((kh % 2) * 2 + (kw % 2),
                             (kh // 2) * pw_n + (kw // 2)))
    flat_needed = mrows + max(off for _, off in taps)
    flat = max(((flat_needed + 7) // 8) * 8, ph_n * pw_n)
    xph = jnp.stack([p.reshape(n, ph_n * pw_n, cin) for p in phases], axis=1)
    xph = jnp.pad(xph, ((0, 0), (0, 0), (0, flat - ph_n * pw_n), (0, 0)))

    out = pl.pallas_call(
        _make_conv_kernel(taps, mrows),
        out_shape=jax.ShapeDtypeStruct((n, mrows, cout), jnp.float32),
        grid_spec=pltpu.PrefetchScalarGridSpec(
            num_scalar_prefetch=0,
            grid=(n,),
            in_specs=[
                pl.BlockSpec((1, nphase, flat, cin), lambda i: (i, 0, 0, 0)),
                pl.BlockSpec((9, cin, cout), lambda i: (0, 0, 0)),
                pl.BlockSpec((1, cout), lambda i: (0, 0)),
            ],
            out_specs=pl.BlockSpec((1, mrows, cout), lambda i: (i, 0, 0)),
        ),
        compiler_params=pltpu.CompilerParams(
            dimension_semantics=("parallel",)),
    )(xph, w9, b_row)
    y = out.reshape(n, oh, pw_n, cout)[:, :, :ow, :]         # drop wrap columns
    return jnp.transpose(y, (0, 3, 1, 2))                    # -> NCHW


# ---------------------------------------------------------------------------
# Module
# ---------------------------------------------------------------------------

class ResNet18Pallas:
    # (in_channels, out_channels, stride) for every quantized Conv2d (3x3, pad=1)
    _CONVS = {
        10: (128, 128, 1), 11: (64, 128, 2), 12: (128, 128, 1),
        14: (128, 128, 1), 15: (128, 256, 2), 17: (256, 256, 1),
        18: (128, 256, 2), 19: (256, 256, 1), 21: (256, 256, 1),
        22: (256, 512, 2), 24: (512, 512, 1), 25: (256, 512, 2),
        26: (512, 512, 2), 28: (512, 512, 2),
    }
    _RELUS = (9, 13, 16, 20, 23, 27)

    def __init__(self, batch_size=8, key=None):
        b = batch_size
        # input shapes x_i (NCHW, matching the PyTorch module)
        self.x_shapes = {
            9: (b, 128, 28, 28), 10: (b, 128, 28, 28), 11: (b, 64, 28, 28),
            12: (b, 128, 28, 28), 13: (b, 128, 28, 28), 14: (b, 128, 28, 28),
            15: (b, 128, 28, 28), 16: (b, 256, 14, 14), 17: (b, 256, 14, 14),
            18: (b, 128, 28, 28), 19: (b, 256, 14, 14), 20: (b, 256, 14, 14),
            21: (b, 256, 14, 14), 22: (b, 256, 14, 14), 23: (b, 512, 7, 7),
            24: (b, 512, 7, 7), 25: (b, 256, 14, 14), 26: (b, 512, 7, 7),
            27: (b, 512, 4, 4), 28: (b, 512, 4, 4), 29: (b, 512, 2, 2),
            30: (b, 512),
        }
        if key is None:
            key = jax.random.PRNGKey(0)
        # conv weights: pre-layout to (9, Cin, Cout) bf16 + (1, Cout) f32 bias
        self.params = {}
        for idx, (cin, cout, _) in sorted(self._CONVS.items()):
            key, kw, kb = jax.random.split(key, 3)
            w = jax.random.normal(kw, (cout, cin, 3, 3), jnp.float32) * 0.05
            bb = jax.random.normal(kb, (cout,), jnp.float32) * 0.01
            w9 = jnp.transpose(w, (2, 3, 1, 0)).reshape(9, cin, cout)
            self.params[idx] = (w9.astype(jnp.bfloat16), bb.reshape(1, cout))
        # linear (nnq.Linear(512, 1000)): weight (1000, 512), bias (1000,)
        key, kw, kb = jax.random.split(key, 3)
        fc_w = jax.random.normal(kw, (1000, 512), jnp.float32) * 0.05
        fc_b = jax.random.normal(kb, (1000,), jnp.float32) * 0.01
        self.fc_wp = jnp.pad(fc_w.T, ((0, 0), (0, 24))).astype(jnp.bfloat16)  # (512,1024)
        self.fc_bp = jnp.pad(fc_b.reshape(1, -1), ((0, 0), (0, 24)))          # (1,1024)

        self._conv_fn = jax.jit(conv3x3_op, static_argnames=("stride",))
        self._relu_fn = jax.jit(relu_op)
        self._pool_fn = jax.jit(avgpool_1x1_op)
        self._fc_fn = jax.jit(linear_op, static_argnames=("n_out",))

        self._data_key = jax.random.PRNGKey(1234)
        self.outputs = {}

    def _has_op(self, i):
        return i in self._RELUS or i in self._CONVS or i in (29, 30)

    def _apply_op(self, i, x):
        # fake-quant of the op input is fused into each jitted op / kernel
        if i in self._RELUS:
            return self._relu_fn(x)
        if i in self._CONVS:
            _, _, stride = self._CONVS[i]
            w9, b_row = self.params[i]
            return self._conv_fn(x, w9, b_row, stride=stride)
        if i == 29:
            return self._pool_fn(x)
        if i == 30:
            return self._fc_fn(x, self.fc_wp, self.fc_bp, n_out=1000)
        raise KeyError(i)

    def forward(self, i):
        # TODO(synk): warmup branch (i == -1) and wall-clock timing loop are
        # benchmarking harness logic, not kernel compute; omitted.
        while True:
            if self._has_op(i):
                self._data_key, sub = jax.random.split(self._data_key)
                x = jax.random.uniform(sub, self.x_shapes[i], jnp.float32)
                self.outputs[f"OP{i}"] = self._apply_op(i, x)
                i += 1
            else:
                return i


if __name__ == "__main__":
    # SMALL shapes: batch=2 (channel/spatial structure fixed by the module's conv defs)
    model = ResNet18Pallas(batch_size=2, key=jax.random.PRNGKey(0))
    final_i = model.forward(9)          # walks OP9 .. OP30
    for v in model.outputs.values():
        jax.block_until_ready(v)
    assert final_i == 31
    # sanity: shape checks against the PyTorch semantics
    assert model.outputs["OP9"].shape == (2, 128, 28, 28)
    assert model.outputs["OP10"].shape == (2, 128, 28, 28)   # stride-1 conv
    assert model.outputs["OP11"].shape == (2, 128, 14, 14)   # stride-2 conv 64->128
    assert model.outputs["OP22"].shape == (2, 512, 7, 7)     # stride-2 conv on 14x14
    assert model.outputs["OP26"].shape == (2, 512, 4, 4)     # stride-2 conv on 7x7
    assert model.outputs["OP29"].shape == (2, 512, 1, 1)     # adaptive avg pool
    assert model.outputs["OP30"].shape == (2, 1000)          # linear
    print("KERNEL_OK")
</pallas_src>

<mosaic_0001>
module attributes {stable_mosaic.version = 11 : i64} {
  func.func @_relu_q_kernel(%arg0: i32, %arg1: memref<128x1024xf32, #tpu.memory_space<vmem>>, %arg2: memref<128x1024xf32, #tpu.memory_space<vmem>>) attributes {dimension_semantics = [#tpu.dimension_semantics<parallel>], iteration_bounds = array<i64: 2>, scalar_prefetch = 0 : i64, scratch_operands = 0 : i64, tpu.core_type = #tpu.core_type<tc>, window_params = [{transform_indices = @transform_0, window_bounds = array<i64: 128, 1024>}, {transform_indices = @transform_1, window_bounds = array<i64: 128, 1024>}]} {
    %c0 = arith.constant 0 : index
    %c0_0 = arith.constant 0 : index
    %0 = vector.load %arg1[%c0, %c0_0] : memref<128x1024xf32, #tpu.memory_space<vmem>>, vector<128x1024xf32>
    %cst = arith.constant 4.720000e-02 : f32
    %1 = vector.broadcast %cst : f32 to vector<128x1024xf32>
    %2 = arith.divf %0, %1 : vector<128x1024xf32>
    %3 = math.roundeven %2 : vector<128x1024xf32>
    %cst_1 = arith.constant 6.400000e+01 : f32
    %4 = vector.broadcast %cst_1 : f32 to vector<128x1024xf32>
    %5 = arith.addf %3, %4 : vector<128x1024xf32>
    %cst_2 = arith.constant 0.000000e+00 : f32
    %cst_3 = arith.constant 2.550000e+02 : f32
    %6 = vector.broadcast %cst_2 : f32 to vector<128x1024xf32>
    %7 = arith.maximumf %6, %5 : vector<128x1024xf32>
    %8 = vector.broadcast %cst_3 : f32 to vector<128x1024xf32>
    %9 = arith.minimumf %8, %7 : vector<128x1024xf32>
    %cst_4 = arith.constant 6.400000e+01 : f32
    %10 = vector.broadcast %cst_4 : f32 to vector<128x1024xf32>
    %11 = arith.subf %9, %10 : vector<128x1024xf32>
    %cst_5 = arith.constant 4.720000e-02 : f32
    %12 = vector.broadcast %cst_5 : f32 to vector<128x1024xf32>
    %13 = arith.mulf %11, %12 : vector<128x1024xf32>
    %cst_6 = arith.constant 0.000000e+00 : f32
    %14 = vector.broadcast %cst_6 : f32 to vector<128x1024xf32>
    %15 = arith.maximumf %13, %14 : vector<128x1024xf32>
    %c0_7 = arith.constant 0 : index
    %c0_8 = arith.constant 0 : index
    %16 = vector.load %arg2[%c0_7, %c0_8] : memref<128x1024xf32, #tpu.memory_space<vmem>>, vector<128x1024xf32>
    tpu.vector_store %arg2[%c0_7, %c0_8], %15 {strides = array<i32>} : memref<128x1024xf32, #tpu.memory_space<vmem>>, vector<128x1024xf32>,
    return
  }
  func.func @transform_0(%arg0: i32) -> (i32, i32) {
    %c0_i32 = arith.constant 0 : i32
    %c0_i32_0 = arith.constant 0 : i32
    return %arg0, %c0_i32 : i32, i32
  }
  func.func @transform_1(%arg0: i32) -> (i32, i32) {
    %c0_i32 = arith.constant 0 : i32
    %c0_i32_0 = arith.constant 0 : i32
    return %arg0, %c0_i32 : i32, i32
  }
}

</mosaic_0001>

<llo_original>
// kernel: relu_op.1
$region0: #{relu_op.1}
  #allocation0 [shape = 'u32[]', space=smem, size = 0x4, offset = 0x4, fixed_abs, tag = 'smem constant byte address 0x4 - core index']
  #allocation1 [shape = 'u32[144,128]{1,0:T(1,128)}', space=vmem, size = 0x12000, scoped, tag = 'internal scratch']
  %s0 = inlined_call_operand.vmem [shape: f32[256,1024], index: 0, kind: input, shape index: {}]
  %s1 = inlined_call_operand.vmem [shape: f32[256,1024], index: 1, kind: output, shape index: {}]
  %s2 = sld [smem:[#allocation0]]
  $region37: #{relu_op.1} parent=0
    _
  %s4 = ssub.s32 1, %s2
  %s5 = scalar_select 0, %s4, %s2
  loop: start=0, step=1, limit=4
  $region2: #{relu_op.1} parent=0 // loop_pre_header
    _
  $region3: #{relu_op.1} parent=0 // loop_header
    %s7 = sphi 0, %s11
    %p8 = scmp.ge.s32.totalorder %s7, 4
    %s17 = sphi 0, %s19
    %s20 = sphi 0, %s17
    %s21 = sphi 0, %s20
    %s37 = sphi 0, %s21
    %s43 = sphi 0, %s45
    %s46 = sphi 0, %s43
    %s47 = sphi 0, %s46
    %s63 = sphi 0, %s47
  $region4: #{relu_op.1} parent=0 // loop_header_branch
    %10 = sbr.rel (%p8) target = $region8
  $region5: #{relu_op.1} parent=0 // loop_body
    %s12 = ssub.s32 %s7, 1
    %s13 = ssub.s32 %s7, 2
    %s14 = sadd.s32 %s7, 1
    %s15 = ssub.s32 %s7, %s14
    %p16 = scmp.eq.s32.totalorder %s15, 0
    %s18 = sadd.s32 %s17, 1
    %s19 = scalar_select %p16, %s17, %s18
    %p22 = pneg %p16
    %p23 = scmp.eq.s32.totalorder %s7, 1
    %p24 = por %p22, %p23
    %p25 = scmp.ne.s32.totalorder %s17, %s20
    %p26 = scmp.eq.s32.totalorder %s7, 0
    %p27 = por %p25, %p26
    %p28 = scmp.ne.s32.totalorder %s17, %s20
    %p29 = scmp.eq.s32.totalorder %s12, 1
    %p30 = por %p28, %p29
    %p31 = scmp.ne.s32.totalorder %s20, %s21
    %p32 = scmp.eq.s32.totalorder %s12, 0
    %p33 = por %p31, %p32
    %p34 = scmp.ne.s32.totalorder %s20, %s21
    %p35 = scmp.eq.s32.totalorder %s13, 1
    %p36 = por %p34, %p35
    %p38 = scmp.ne.s32.totalorder %s21, %s37
    %p39 = scmp.eq.s32.totalorder %s13, 0
    %p40 = por %p38, %p39
    %s41 = ssub.s32 %s7, %s14
    %p42 = scmp.eq.s32.totalorder %s41, 0
    %s44 = sadd.s32 %s43, 1
    %s45 = scalar_select %p42, %s43, %s44
    %p48 = pneg %p42
    %p49 = scmp.eq.s32.totalorder %s7, 1
    %p50 = por %p48, %p49
    %p51 = scmp.ne.s32.totalorder %s43, %s46
    %p52 = scmp.eq.s32.totalorder %s7, 0
    %p53 = por %p51, %p52
    %p54 = scmp.ne.s32.totalorder %s43, %s46
    %p55 = scmp.eq.s32.totalorder %s12, 1
    %p56 = por %p54, %p55
    %p57 = scmp.ne.s32.totalorder %s46, %s47
    %p58 = scmp.eq.s32.totalorder %s12, 0
    %p59 = por %p57, %p58
    %p60 = scmp.ne.s32.totalorder %s46, %s47
    %p61 = scmp.eq.s32.totalorder %s13, 1
    %p62 = por %p60, %p61
    %p64 = scmp.ne.s32.totalorder %s47, %s63
    %p65 = scmp.eq.s32.totalorder %s13, 0
    %p66 = por %p64, %p65
    %p67 = scmp.le.s32.totalorder 1, %s7
    %p68 = scmp.lt.s32.totalorder %s7, 3
    %p69 = pnand %p67, %p68
    %p70 = pneg %p69
    // Predicated region
    $region9: #{relu_op.1} parent=5 // pred_check
      _
    $region10: #{relu_op.1} parent=5 // pred_check_branch
      %72 = sbr.rel (%p69) target = $region12
    $region11: #{relu_op.1} parent=5 // pred_region
      %s73 = ssub.s32 %s7, 1
    $region12: #{relu_op.1} parent=5 // pred_fallthru
      _
    %p74 = scmp.lt.s32.totalorder %s7, 2
    // Predicated region
    $region13: #{relu_op.1} parent=5 // pred_check
      %p75 = pneg %p74
    $region14: #{relu_op.1} parent=5 // pred_check_branch
      %77 = sbr.rel (%p75) target = $region16
    $region15: #{relu_op.1} parent=5 // pred_region
      // Predicated region
      $region17: #{relu_op.1} parent=15 // pred_check
        %p78 = pneg %p27
      $region18: #{relu_op.1} parent=15 // pred_check_branch
        %80 = sbr.rel (%p78) target = $region20
      $region19: #{relu_op.1} parent=15 // pred_region
        %s81 = smul.u32 16, %s7
        %p82 = scmp.lt.s32.totalorder %s81, 31
        %s83 = scalar_select %p82, %s81, 31
        %s84 = smul.addr %s83, 8
        %s85 = smul.addr %s84, 8
        %s86 = scalar_lea.vmem %s0, %s85
        %s87 = smul.u32 16, %s7
      $region20: #{relu_op.1} parent=15 // pred_fallthru
        _
    $region16: #{relu_op.1} parent=5 // pred_fallthru
      _
    %p88 = scmp.le.s32.totalorder 1, %s7
    %p89 = scmp.lt.s32.totalorder %s7, 3
    %p90 = pnand %p88, %p89
    %p91 = pneg %p90
    // Predicated region
    $region21: #{relu_op.1} parent=5 // pred_check
      _
    $region22: #{relu_op.1} parent=5 // pred_check_branch
      %93 = sbr.rel (%p90) target = $region24
    $region23: #{relu_op.1} parent=5 // pred_region
      %s94 = ssub.s32 %s7, 1
      %s95 = smul.u32 16, %s12
      %p96 = scmp.lt.s32.totalorder %s95, 31
      %s97 = scalar_select %p96, %s95, 31
      %s98 = smul.addr %s97, 8
      %s99 = smul.addr %s98, 8
      %s100 = scalar_lea.vmem %s0, %s99
      %p101 = pneg %p33
      %p102 = pneg %p30
      %p103 = pneg %p59
      %p104 = pneg %p56
      %s105 = smul.u32 16, %s12
      %p106 = scmp.lt.s32.totalorder %s105, 31
      %s107 = scalar_select %p106, %s105, 31
      %s108 = smul.addr %s107, 8
      %s109 = smul.addr %s108, 8
      %s110 = scalar_lea.vmem %s1, %s109
      %s111 = smul.u32 16, %s12
      %p112 = scmp.lt.s32.totalorder %s111, 31
      %s113 = scalar_select %p112, %s111, 31
      %s114 = smul.addr %s113, 8
      %s115 = smul.addr %s114, 8
      %s116 = scalar_lea.vmem %s0, %s115
      %s117 = smul.u32 16, %s12
      %s118 = smul.u32 16, %s12
      %p119 = scmp.lt.s32.totalorder %s118, 31
      %s120 = scalar_select %p119, %s118, 31
      %s121 = smul.addr %s120, 8
      %s122 = smul.addr %s121, 8
      %s123 = scalar_lea.vmem %s1, %s122
      %s124 = smul.u32 16, %s12
      %v125 = vld [vmem:[%s116] sm:$0xff]
      %v126 = vld [vmem:[%s116 + $0x8] sm:$0xff]
      %v127 = vld [vmem:[%s116 + $0x10] sm:$0xff]
      %v128 = vld [vmem:[%s116 + $0x18] sm:$0xff]
      %v129 = vld [vmem:[%s116 + $0x20] sm:$0xff]
      %v130 = vld [vmem:[%s116 + $0x28] sm:$0xff]
      %v131 = vld [vmem:[%s116 + $0x30] sm:$0xff]
      %v132 = vld [vmem:[%s116 + $0x38] sm:$0xff]
      %v133 = vld [vmem:[%s116 + $0x40] sm:$0xff]
      %v134 = vld [vmem:[%s116 + $0x48] sm:$0xff]
      %v135 = vld [vmem:[%s116 + $0x50] sm:$0xff]
      %v136 = vld [vmem:[%s116 + $0x58] sm:$0xff]
      %v137 = vld [vmem:[%s116 + $0x60] sm:$0xff]
      %v138 = vld [vmem:[%s116 + $0x68] sm:$0xff]
      %v139 = vld [vmem:[%s116 + $0x70] sm:$0xff]
      %v140 = vld [vmem:[%s116 + $0x78] sm:$0xff]
      %v141 = vld [vmem:[%s116 + $0x80] sm:$0xff]
      %v142 = vld [vmem:[%s116 + $0x88] sm:$0xff]
      %v143 = vld [vmem:[%s116 + $0x90] sm:$0xff]
      %v144 = vld [vmem:[%s116 + $0x98] sm:$0xff]
      %v145 = vld [vmem:[%s116 + $0xa0] sm:$0xff]
      %v146 = vld [vmem:[%s116 + $0xa8] sm:$0xff]
      %v147 = vld [vmem:[%s116 + $0xb0] sm:$0xff]
      %v148 = vld [vmem:[%s116 + $0xb8] sm:$0xff]
      %v149 = vld [vmem:[%s116 + $0xc0] sm:$0xff]
      %v150 = vld [vmem:[%s116 + $0xc8] sm:$0xff]
      %v151 = vld [vmem:[%s116 + $0xd0] sm:$0xff]
      %v152 = vld [vmem:[%s116 + $0xd8] sm:$0xff]
      %v153 = vld [vmem:[%s116 + $0xe0] sm:$0xff]
      %v154 = vld [vmem:[%s116 + $0xe8] sm:$0xff]
      %v155 = vld [vmem:[%s116 + $0xf0] sm:$0xff]
      %v156 = vld [vmem:[%s116 + $0xf8] sm:$0xff]
      %v157 = vld [vmem:[%s116 + $0x100] sm:$0xff]
      %v158 = vld [vmem:[%s116 + $0x108] sm:$0xff]
      %v159 = vld [vmem:[%s116 + $0x110] sm:$0xff]
      %v160 = vld [vmem:[%s116 + $0x118] sm:$0xff]
      %v161 = vld [vmem:[%s116 + $0x120] sm:$0xff]
      %v162 = vld [vmem:[%s116 + $0x128] sm:$0xff]
      %v163 = vld [vmem:[%s116 + $0x130] sm:$0xff]
      %v164 = vld [vmem:[%s116 + $0x138] sm:$0xff]
      %v165 = vld [vmem:[%s116 + $0x140] sm:$0xff]
      %v166 = vld [vmem:[%s116 + $0x148] sm:$0xff]
      %v167 = vld [vmem:[%s116 + $0x150] sm:$0xff]
      %v168 = vld [vmem:[%s116 + $0x158] sm:$0xff]
      %v169 = vld [vmem:[%s116 + $0x160] sm:$0xff]
      %v170 = vld [vmem:[%s116 + $0x168] sm:$0xff]
      %v171 = vld [vmem:[%s116 + $0x170] sm:$0xff]
      %v172 = vld [vmem:[%s116 + $0x178] sm:$0xff]
      %v173 = vld [vmem:[%s116 + $0x180] sm:$0xff]
      %v174 = vld [vmem:[%s116 + $0x188] sm:$0xff]
      %v175 = vld [vmem:[%s116 + $0x190] sm:$0xff]
      %v176 = vld [vmem:[%s116 + $0x198] sm:$0xff]
      %v177 = vld [vmem:[%s116 + $0x1a0] sm:$0xff]
      %v178 = vld [vmem:[%s116 + $0x1a8] sm:$0xff]
      %v179 = vld [vmem:[%s116 + $0x1b0] sm:$0xff]
      %v180 = vld [vmem:[%s116 + $0x1b8] sm:$0xff]
      %v181 = vld [vmem:[%s116 + $0x1c0] sm:$0xff]
      %v182 = vld [vmem:[%s116 + $0x1c8] sm:$0xff]
      %v183 = vld [vmem:[%s116 + $0x1d0] sm:$0xff]
      %v184 = vld [vmem:[%s116 + $0x1d8] sm:$0xff]
      %v185 = vld [vmem:[%s116 + $0x1e0] sm:$0xff]
      %v186 = vld [vmem:[%s116 + $0x1e8] sm:$0xff]
      %v187 = vld [vmem:[%s116 + $0x1f0] sm:$0xff]
      %v188 = vld [vmem:[%s116 + $0x1f8] sm:$0xff]
      %v189 = vld [vmem:[%s116 + $0x200] sm:$0xff]
      %v190 = vld [vmem:[%s116 + $0x208] sm:$0xff]
      %v191 = vld [vmem:[%s116 + $0x210] sm:$0xff]
      %v192 = vld [vmem:[%s116 + $0x218] sm:$0xff]
      %v193 = vld [vmem:[%s116 + $0x220] sm:$0xff]
      %v194 = vld [vmem:[%s116 + $0x228] sm:$0xff]
      %v195 = vld [vmem:[%s116 + $0x230] sm:$0xff]
      %v196 = vld [vmem:[%s116 + $0x238] sm:$0xff]
      %v197 = vld [vmem:[%s116 + $0x240] sm:$0xff]
      %v198 = vld [vmem:[%s116 + $0x248] sm:$0xff]
      %v199 = vld [vmem:[%s116 + $0x250] sm:$0xff]
      %v200 = vld [vmem:[%s116 + $0x258] sm:$0xff]
      %v201 = vld [vmem:[%s116 + $0x260] sm:$0xff]
      %v202 = vld [vmem:[%s116 + $0x268] sm:$0xff]
      %v203 = vld [vmem:[%s116 + $0x270] sm:$0xff]
      %v204 = vld [vmem:[%s116 + $0x278] sm:$0xff]
      %v205 = vld [vmem:[%s116 + $0x280] sm:$0xff]
      %v206 = vld [vmem:[%s116 + $0x288] sm:$0xff]
      %v207 = vld [vmem:[%s116 + $0x290] sm:$0xff]
      %v208 = vld [vmem:[%s116 + $0x298] sm:$0xff]
      %v209 = vld [vmem:[%s116 + $0x2a0] sm:$0xff]
      %v210 = vld [vmem:[%s116 + $0x2a8] sm:$0xff]
      %v211 = vld [vmem:[%s116 + $0x2b0] sm:$0xff]
      %v212 = vld [vmem:[%s116 + $0x2b8] sm:$0xff]
      %v213 = vld [vmem:[%s116 + $0x2c0] sm:$0xff]
      %v214 = vld [vmem:[%s116 + $0x2c8] sm:$0xff]
      %v215 = vld [vmem:[%s116 + $0x2d0] sm:$0xff]
      %v216 = vld [vmem:[%s116 + $0x2d8] sm:$0xff]
      %v217 = vld [vmem:[%s116 + $0x2e0] sm:$0xff]
      %v218 = vld [vmem:[%s116 + $0x2e8] sm:$0xff]
      %v219 = vld [vmem:[%s116 + $0x2f0] sm:$0xff]
      %v220 = vld [vmem:[%s116 + $0x2f8] sm:$0xff]
      %v221 = vld [vmem:[%s116 + $0x300] sm:$0xff]
      %v222 = vld [vmem:[%s116 + $0x308] sm:$0xff]
      %v223 = vld [vmem:[%s116 + $0x310] sm:$0xff]
      %v224 = vld [vmem:[%s116 + $0x318] sm:$0xff]
      %v225 = vld [vmem:[%s116 + $0x320] sm:$0xff]
      %v226 = vld [vmem:[%s116 + $0x328] sm:$0xff]
      %v227 = vld [vmem:[%s116 + $0x330] sm:$0xff]
      %v228 = vld [vmem:[%s116 + $0x338] sm:$0xff]
      %v229 = vld [vmem:[%s116 + $0x340] sm:$0xff]
      %v230 = vld [vmem:[%s116 + $0x348] sm:$0xff]
      %v231 = vld [vmem:[%s116 + $0x350] sm:$0xff]
      %v232 = vld [vmem:[%s116 + $0x358] sm:$0xff]
      %v233 = vld [vmem:[%s116 + $0x360] sm:$0xff]
      %v234 = vld [vmem:[%s116 + $0x368] sm:$0xff]
      %v235 = vld [vmem:[%s116 + $0x370] sm:$0xff]
      %v236 = vld [vmem:[%s116 + $0x378] sm:$0xff]
      %v237 = vld [vmem:[%s116 + $0x380] sm:$0xff]
      %v238 = vld [vmem:[%s116 + $0x388] sm:$0xff]
      %v239 = vld [vmem:[%s116 + $0x390] sm:$0xff]
      %v240 = vld [vmem:[%s116 + $0x398] sm:$0xff]
      %v241 = vld [vmem:[%s116 + $0x3a0] sm:$0xff]
      %v242 = vld [vmem:[%s116 + $0x3a8] sm:$0xff]
      %v243 = vld [vmem:[%s116 + $0x3b0] sm:$0xff]
      %v244 = vld [vmem:[%s116 + $0x3b8] sm:$0xff]
      %v245 = vld [vmem:[%s116 + $0x3c0] sm:$0xff]
      %v246 = vld [vmem:[%s116 + $0x3c8] sm:$0xff]
      %v247 = vld [vmem:[%s116 + $0x3d0] sm:$0xff]
      %v248 = vld [vmem:[%s116 + $0x3d8] sm:$0xff]
      %v249 = vld [vmem:[%s116 + $0x3e0] sm:$0xff]
      %v250 = vld [vmem:[%s116 + $0x3e8] sm:$0xff]
      %v251 = vld [vmem:[%s116 + $0x3f0] sm:$0xff]
      %v252 = vld [vmem:[%s116 + $0x3f8] sm:$0xff]
      %v253 = vrcp.pop 0.0472
      %v254 = vmul.f32 %v125, %v253
      %v255 = vmul.f32 %v126, %v253
      %v256 = vmul.f32 %v127, %v253
      %v257 = vmul.f32 %v128, %v253
      %v258 = vmul.f32 %v129, %v253
      %v259 = vmul.f32 %v130, %v253
      %v260 = vmul.f32 %v131, %v253
      %v261 = vmul.f32 %v132, %v253
      %v262 = vmul.f32 %v133, %v253
      %v263 = vmul.f32 %v134, %v253
      %v264 = vmul.f32 %v135, %v253
      %v265 = vmul.f32 %v136, %v253
      %v266 = vmul.f32 %v137, %v253
      %v267 = vmul.f32 %v138, %v253
      %v268 = vmul.f32 %v139, %v253
      %v269 = vmul.f32 %v140, %v253
      %v270 = vmul.f32 %v141, %v253
      %v271 = vmul.f32 %v142, %v253
      %v272 = vmul.f32 %v143, %v253
      %v273 = vmul.f32 %v144, %v253
      %v274 = vmul.f32 %v145, %v253
      %v275 = vmul.f32 %v146, %v253
      %v276 = vmul.f32 %v147, %v253
      %v277 = vmul.f32 %v148, %v253
      %v278 = vmul.f32 %v149, %v253
      %v279 = vmul.f32 %v150, %v253
      %v280 = vmul.f32 %v151, %v253
      %v281 = vmul.f32 %v152, %v253
      %v282 = vmul.f32 %v153, %v253
      %v283 = vmul.f32 %v154, %v253
      %v284 = vmul.f32 %v155, %v253
      %v285 = vmul.f32 %v156, %v253
      %v286 = vmul.f32 %v157, %v253
      %v287 = vmul.f32 %v158, %v253
      %v288 = vmul.f32 %v159, %v253
      %v289 = vmul.f32 %v160, %v253
      %v290 = vmul.f32 %v161, %v253
      %v291 = vmul.f32 %v162, %v253
      %v292 = vmul.f32 %v163, %v253
      %v293 = vmul.f32 %v164, %v253
      %v294 = vmul.f32 %v165, %v253
      %v295 = vmul.f32 %v166, %v253
      %v296 = vmul.f32 %v167, %v253
      %v297 = vmul.f32 %v168, %v253
      %v298 = vmul.f32 %v169, %v253
      %v299 = vmul.f32 %v170, %v253
      %v300 = vmul.f32 %v171, %v253
      %v301 = vmul.f32 %v172, %v253
      %v302 = vmul.f32 %v173, %v253
      %v303 = vmul.f32 %v174, %v253
      %v304 = vmul.f32 %v175, %v253
      %v305 = vmul.f32 %v176, %v253
      %v306 = vmul.f32 %v177, %v253
      %v307 = vmul.f32 %v178, %v253
      %v308 = vmul.f32 %v179, %v253
      %v309 = vmul.f32 %v180, %v253
      %v310 = vmul.f32 %v181, %v253
      %v311 = vmul.f32 %v182, %v253
      %v312 = vmul.f32 %v183, %v253
      %v313 = vmul.f32 %v184, %v253
      %v314 = vmul.f32 %v185, %v253
      %v315 = vmul.f32 %v186, %v253
      %v316 = vmul.f32 %v187, %v253
      %v317 = vmul.f32 %v188, %v253
      %v318 = vmul.f32 %v189, %v253
      %v319 = vmul.f32 %v190, %v253
      %v320 = vmul.f32 %v191, %v253
      %v321 = vmul.f32 %v192, %v253
      %v322 = vmul.f32 %v193, %v253
      %v323 = vmul.f32 %v194, %v253
      %v324 = vmul.f32 %v195, %v253
      %v325 = vmul.f32 %v196, %v253
      %v326 = vmul.f32 %v197, %v253
      %v327 = vmul.f32 %v198, %v253
      %v328 = vmul.f32 %v199, %v253
      %v329 = vmul.f32 %v200, %v253
      %v330 = vmul.f32 %v201, %v253
      %v331 = vmul.f32 %v202, %v253
      %v332 = vmul.f32 %v203, %v253
      %v333 = vmul.f32 %v204, %v253
      %v334 = vmul.f32 %v205, %v253
      %v335 = vmul.f32 %v206, %v253
      %v336 = vmul.f32 %v207, %v253
      %v337 = vmul.f32 %v208, %v253
      %v338 = vmul.f32 %v209, %v253
      %v339 = vmul.f32 %v210, %v253
      %v340 = vmul.f32 %v211, %v253
      %v341 = vmul.f32 %v212, %v253
      %v342 = vmul.f32 %v213, %v253
      %v343 = vmul.f32 %v214, %v253
      %v344 = vmul.f32 %v215, %v253
      %v345 = vmul.f32 %v216, %v253
      %v346 = vmul.f32 %v217, %v253
      %v347 = vmul.f32 %v218, %v253
      %v348 = vmul.f32 %v219, %v253
      %v349 = vmul.f32 %v220, %v253
      %v350 = vmul.f32 %v221, %v253
      %v351 = vmul.f32 %v222, %v253
      %v352 = vmul.f32 %v223, %v253
      %v353 = vmul.f32 %v224, %v253
      %v354 = vmul.f32 %v225, %v253
      %v355 = vmul.f32 %v226, %v253
      %v356 = vmul.f32 %v227, %v253
      %v357 = vmul.f32 %v228, %v253
      %v358 = vmul.f32 %v229, %v253
      %v359 = vmul.f32 %v230, %v253
      %v360 = vmul.f32 %v231, %v253
      %v361 = vmul.f32 %v232, %v253
      %v362 = vmul.f32 %v233, %v253
      %v363 = vmul.f32 %v234, %v253
      %v364 = vmul.f32 %v235, %v253
      %v365 = vmul.f32 %v236, %v253
      %v366 = vmul.f32 %v237, %v253
      %v367 = vmul.f32 %v238, %v253
      %v368 = vmul.f32 %v239, %v253
      %v369 = vmul.f32 %v240, %v253
      %v370 = vmul.f32 %v241, %v253
      %v371 = vmul.f32 %v242, %v253
      %v372 = vmul.f32 %v243, %v253
      %v373 = vmul.f32 %v244, %v253
      %v374 = vmul.f32 %v245, %v253
      %v375 = vmul.f32 %v246, %v253
      %v376 = vmul.f32 %v247, %v253
      %v377 = vmul.f32 %v248, %v253
      %v378 = vmul.f32 %v249, %v253
      %v379 = vmul.f32 %v250, %v253
      %v380 = vmul.f32 %v251, %v253
      %v381 = vmul.f32 %v252, %v253
      %v382 = vround.ne.pseudo %v254
      %v383 = vround.ne.pseudo %v255
      %v384 = vround.ne.pseudo %v256
      %v385 = vround.ne.pseudo %v257
      %v386 = vround.ne.pseudo %v258
      %v387 = vround.ne.pseudo %v259
      %v388 = vround.ne.pseudo %v260
      %v389 = vround.ne.pseudo %v261
      %v390 = vround.ne.pseudo %v262
      %v391 = vround.ne.pseudo %v263
      %v392 = vround.ne.pseudo %v264
      %v393 = vround.ne.pseudo %v265
      %v394 = vround.ne.pseudo %v266
      %v395 = vround.ne.pseudo %v267
      %v396 = vround.ne.pseudo %v268
      %v397 = vround.ne.pseudo %v269
      %v398 = vround.ne.pseudo %v270
      %v399 = vround.ne.pseudo %v271
      %v400 = vround.ne.pseudo %v272
      %v401 = vround.ne.pseudo %v273
      %v402 = vround.ne.pseudo %v274
      %v403 = vround.ne.pseudo %v275
      %v404 = vround.ne.pseudo %v276
      %v405 = vround.ne.pseudo %v277
      %v406 = vround.ne.pseudo %v278
      %v407 = vround.ne.pseudo %v279
      %v408 = vround.ne.pseudo %v280
      %v409 = vround.ne.pseudo %v281
      %v410 = vround.ne.pseudo %v282
      %v411 = vround.ne.pseudo %v283
      %v412 = vround.ne.pseudo %v284
      %v413 = vround.ne.pseudo %v285
      %v414 = vround.ne.pseudo %v286
      %v415 = vround.ne.pseudo %v287
      %v416 = vround.ne.pseudo %v288
      %v417 = vround.ne.pseudo %v289
      %v418 = vround.ne.pseudo %v290
      %v419 = vround.ne.pseudo %v291
      %v420 = vround.ne.pseudo %v292
      %v421 = vround.ne.pseudo %v293
      %v422 = vround.ne.pseudo %v294
      %v423 = vround.ne.pseudo %v295
      %v424 = vround.ne.pseudo %v296
      %v425 = vround.ne.pseudo %v297
      %v426 = vround.ne.pseudo %v298
      %v427 = vround.ne.pseudo %v299
      %v428 = vround.ne.pseudo %v300
      %v429 = vround.ne.pseudo %v301
      %v430 = vround.ne.pseudo %v302
      %v431 = vround.ne.pseudo %v303
      %v432 = vround.ne.pseudo %v304
      %v433 = vround.ne.pseudo %v305
      %v434 = vround.ne.pseudo %v306
      %v435 = vround.ne.pseudo %v307
      %v436 = vround.ne.pseudo %v308
      %v437 = vround.ne.pseudo %v309
      %v438 = vround.ne.pseudo %v310
      %v439 = vround.ne.pseudo %v311
      %v440 = vround.ne.pseudo %v312
      %v441 = vround.ne.pseudo %v313
      %v442 = vround.ne.pseudo %v314
      %v443 = vround.ne.pseudo %v315
      %v444 = vround.ne.pseudo %v316
      %v445 = vround.ne.pseudo %v317
      %v446 = vround.ne.pseudo %v318
      %v447 = vround.ne.pseudo %v319
      %v448 = vround.ne.pseudo %v320
      %v449 = vround.ne.pseudo %v321
      %v450 = vround.ne.pseudo %v322
      %v451 = vround.ne.pseudo %v323
      %v452 = vround.ne.pseudo %v324
      %v453 = vround.ne.pseudo %v325
      %v454 = vround.ne.pseudo %v326
      %v455 = vround.ne.pseudo %v327
      %v456 = vround.ne.pseudo %v328
      %v457 = vround.ne.pseudo %v329
      %v458 = vround.ne.pseudo %v330
      %v459 = vround.ne.pseudo %v331
      %v460 = vround.ne.pseudo %v332
      %v461 = vround.ne.pseudo %v333
      %v462 = vround.ne.pseudo %v334
      %v463 = vround.ne.pseudo %v335
      %v464 = vround.ne.pseudo %v336
      %v465 = vround.ne.pseudo %v337
      %v466 = vround.ne.pseudo %v338
      %v467 = vround.ne.pseudo %v339
      %v468 = vround.ne.pseudo %v340
      %v469 = vround.ne.pseudo %v341
      %v470 = vround.ne.pseudo %v342
      %v471 = vround.ne.pseudo %v343
      %v472 = vround.ne.pseudo %v344
      %v473 = vround.ne.pseudo %v345
      %v474 = vround.ne.pseudo %v346
      %v475 = vround.ne.pseudo %v347
      %v476 = vround.ne.pseudo %v348
      %v477 = vround.ne.pseudo %v349
      %v478 = vround.ne.pseudo %v350
      %v479 = vround.ne.pseudo %v351
      %v480 = vround.ne.pseudo %v352
      %v481 = vround.ne.pseudo %v353
      %v482 = vround.ne.pseudo %v354
      %v483 = vround.ne.pseudo %v355
      %v484 = vround.ne.pseudo %v356
      %v485 = vround.ne.pseudo %v357
      %v486 = vround.ne.pseudo %v358
      %v487 = vround.ne.pseudo %v359
      %v488 = vround.ne.pseudo %v360
      %v489 = vround.ne.pseudo %v361
      %v490 = vround.ne.pseudo %v362
      %v491 = vround.ne.pseudo %v363
      %v492 = vround.ne.pseudo %v364
      %v493 = vround.ne.pseudo %v365
      %v494 = vround.ne.pseudo %v366
      %v495 = vround.ne.pseudo %v367
      %v496 = vround.ne.pseudo %v368
      %v497 = vround.ne.pseudo %v369
      %v498 = vround.ne.pseudo %v370
      %v499 = vround.ne.pseudo %v371
      %v500 = vround.ne.pseudo %v372
      %v501 = vround.ne.pseudo %v373
      %v502 = vround.ne.pseudo %v374
      %v503 = vround.ne.pseudo %v375
      %v504 = vround.ne.pseudo %v376
      %v505 = vround.ne.pseudo %v377
      %v506 = vround.ne.pseudo %v378
      %v507 = vround.ne.pseudo %v379
      %v508 = vround.ne.pseudo %v380
      %v509 = vround.ne.pseudo %v381
      %v510 = vadd.f32 %v382, 64.0
      %v511 = vadd.f32 %v383, 64.0
      %v512 = vadd.f32 %v384, 64.0
      %v513 = vadd.f32 %v385, 64.0
      %v514 = vadd.f32 %v386, 64.0
      %v515 = vadd.f32 %v387, 64.0
      %v516 = vadd.f32 %v388, 64.0
      %v517 = vadd.f32 %v389, 64.0
      %v518 = vadd.f32 %v390, 64.0
      %v519 = vadd.f32 %v391, 64.0
      %v520 = vadd.f32 %v392, 64.0
      %v521 = vadd.f32 %v393, 64.0
      %v522 = vadd.f32 %v394, 64.0
      %v523 = vadd.f32 %v395, 64.0
      %v524 = vadd.f32 %v396, 64.0
      %v525 = vadd.f32 %v397, 64.0
      %v526 = vadd.f32 %v398, 64.0
      %v527 = vadd.f32 %v399, 64.0
      %v528 = vadd.f32 %v400, 64.0
      %v529 = vadd.f32 %v401, 64.0
      %v530 = vadd.f32 %v402, 64.0
      %v531 = vadd.f32 %v403, 64.0
      %v532 = vadd.f32 %v404, 64.0
      %v533 = vadd.f32 %v405, 64.0
      %v534 = vadd.f32 %v406, 64.0
      %v535 = vadd.f32 %v407, 64.0
      %v536 = vadd.f32 %v408, 64.0
      %v537 = vadd.f32 %v409, 64.0
      %v538 = vadd.f32 %v410, 64.0
      %v539 = vadd.f32 %v411, 64.0
      %v540 = vadd.f32 %v412, 64.0
      %v541 = vadd.f32 %v413, 64.0
      %v542 = vadd.f32 %v414, 64.0
      %v543 = vadd.f32 %v415, 64.0
      %v544 = vadd.f32 %v416, 64.0
      %v545 = vadd.f32 %v417, 64.0
      %v546 = vadd.f32 %v418, 64.0
      %v547 = vadd.f32 %v419, 64.0
      %v548 = vadd.f32 %v420, 64.0
      %v549 = vadd.f32 %v421, 64.0
      %v550 = vadd.f32 %v422, 64.0
      %v551 = vadd.f32 %v423, 64.0
      %v552 = vadd.f32 %v424, 64.0
      %v553 = vadd.f32 %v425, 64.0
      %v554 = vadd.f32 %v426, 64.0
      %v555 = vadd.f32 %v427, 64.0
      %v556 = vadd.f32 %v428, 64.0
      %v557 = vadd.f32 %v429, 64.0
      %v558 = vadd.f32 %v430, 64.0
      %v559 = vadd.f32 %v431, 64.0
      %v560 = vadd.f32 %v432, 64.0
      %v561 = vadd.f32 %v433, 64.0
      %v562 = vadd.f32 %v434, 64.0
      %v563 = vadd.f32 %v435, 64.0
      %v564 = vadd.f32 %v436, 64.0
      %v565 = vadd.f32 %v437, 64.0
      %v566 = vadd.f32 %v438, 64.0
      %v567 = vadd.f32 %v439, 64.0
      %v568 = vadd.f32 %v440, 64.0
      %v569 = vadd.f32 %v441, 64.0
      %v570 = vadd.f32 %v442, 64.0
      %v571 = vadd.f32 %v443, 64.0
      %v572 = vadd.f32 %v444, 64.0
      %v573 = vadd.f32 %v445, 64.0
      %v574 = vadd.f32 %v446, 64.0
      %v575 = vadd.f32 %v447, 64.0
      %v576 = vadd.f32 %v448, 64.0
      %v577 = vadd.f32 %v449, 64.0
      %v578 = vadd.f32 %v450, 64.0
      %v579 = vadd.f32 %v451, 64.0
      %v580 = vadd.f32 %v452, 64.0
      %v581 = vadd.f32 %v453, 64.0
      %v582 = vadd.f32 %v454, 64.0
      %v583 = vadd.f32 %v455, 64.0
      %v584 = vadd.f32 %v456, 64.0
      %v585 = vadd.f32 %v457, 64.0
      %v586 = vadd.f32 %v458, 64.0
      %v587 = vadd.f32 %v459, 64.0
      %v588 = vadd.f32 %v460, 64.0
      %v589 = vadd.f32 %v461, 64.0
      %v590 = vadd.f32 %v462, 64.0
      %v591 = vadd.f32 %v463, 64.0
      %v592 = vadd.f32 %v464, 64.0
      %v593 = vadd.f32 %v465, 64.0
      %v594 = vadd.f32 %v466, 64.0
      %v595 = vadd.f32 %v467, 64.0
      %v596 = vadd.f32 %v468, 64.0
      %v597 = vadd.f32 %v469, 64.0
      %v598 = vadd.f32 %v470, 64.0
      %v599 = vadd.f32 %v471, 64.0
      %v600 = vadd.f32 %v472, 64.0
      %v601 = vadd.f32 %v473, 64.0
      %v602 = vadd.f32 %v474, 64.0
      %v603 = vadd.f32 %v475, 64.0
      %v604 = vadd.f32 %v476, 64.0
      %v605 = vadd.f32 %v477, 64.0
      %v606 = vadd.f32 %v478, 64.0
      %v607 = vadd.f32 %v479, 64.0
      %v608 = vadd.f32 %v480, 64.0
      %v609 = vadd.f32 %v481, 64.0
      %v610 = vadd.f32 %v482, 64.0
      %v611 = vadd.f32 %v483, 64.0
      %v612 = vadd.f32 %v484, 64.0
      %v613 = vadd.f32 %v485, 64.0
      %v614 = vadd.f32 %v486, 64.0
      %v615 = vadd.f32 %v487, 64.0
      %v616 = vadd.f32 %v488, 64.0
      %v617 = vadd.f32 %v489, 64.0
      %v618 = vadd.f32 %v490, 64.0
      %v619 = vadd.f32 %v491, 64.0
      %v620 = vadd.f32 %v492, 64.0
      %v621 = vadd.f32 %v493, 64.0
      %v622 = vadd.f32 %v494, 64.0
      %v623 = vadd.f32 %v495, 64.0
      %v624 = vadd.f32 %v496, 64.0
      %v625 = vadd.f32 %v497, 64.0
      %v626 = vadd.f32 %v498, 64.0
      %v627 = vadd.f32 %v499, 64.0
      %v628 = vadd.f32 %v500, 64.0
      %v629 = vadd.f32 %v501, 64.0
      %v630 = vadd.f32 %v502, 64.0
      %v631 = vadd.f32 %v503, 64.0
      %v632 = vadd.f32 %v504, 64.0
      %v633 = vadd.f32 %v505, 64.0
      %v634 = vadd.f32 %v506, 64.0
      %v635 = vadd.f32 %v507, 64.0
      %v636 = vadd.f32 %v508, 64.0
      %v637 = vadd.f32 %v509, 64.0
      %v638 = vmax.f32 %v510, 0.0
      %v639 = vmax.f32 %v511, 0.0
      %v640 = vmax.f32 %v512, 0.0
      %v641 = vmax.f32 %v513, 0.0
      %v642 = vmax.f32 %v514, 0.0
      %v643 = vmax.f32 %v515, 0.0
      %v644 = vmax.f32 %v516, 0.0
      %v645 = vmax.f32 %v517, 0.0
      %v646 = vmax.f32 %v518, 0.0
      %v647 = vmax.f32 %v519, 0.0
      %v648 = vmax.f32 %v520, 0.0
      %v649 = vmax.f32 %v521, 0.0
      %v650 = vmax.f32 %v522, 0.0
      %v651 = vmax.f32 %v523, 0.0
      %v652 = vmax.f32 %v524, 0.0
      %v653 = vmax.f32 %v525, 0.0
      %v654 = vmax.f32 %v526, 0.0
      %v655 = vmax.f32 %v527, 0.0
      %v656 = vmax.f32 %v528, 0.0
      %v657 = vmax.f32 %v529, 0.0
      %v658 = vmax.f32 %v530, 0.0
      %v659 = vmax.f32 %v531, 0.0
      %v660 = vmax.f32 %v532, 0.0
      %v661 = vmax.f32 %v533, 0.0
      %v662 = vmax.f32 %v534, 0.0
      %v663 = vmax.f32 %v535, 0.0
      %v664 = vmax.f32 %v536, 0.0
      %v665 = vmax.f32 %v537, 0.0
      %v666 = vmax.f32 %v538, 0.0
      %v667 = vmax.f32 %v539, 0.0
      %v668 = vmax.f32 %v540, 0.0
      %v669 = vmax.f32 %v541, 0.0
      %v670 = vmax.f32 %v542, 0.0
      %v671 = vmax.f32 %v543, 0.0
      %v672 = vmax.f32 %v544, 0.0
      %v673 = vmax.f32 %v545, 0.0
      %v674 = vmax.f32 %v546, 0.0
      %v675 = vmax.f32 %v547, 0.0
      %v676 = vmax.f32 %v548, 0.0
      %v677 = vmax.f32 %v549, 0.0
      %v678 = vmax.f32 %v550, 0.0
      %v679 = vmax.f32 %v551, 0.0
      %v680 = vmax.f32 %v552, 0.0
      %v681 = vmax.f32 %v553, 0.0
      %v682 = vmax.f32 %v554, 0.0
      %v683 = vmax.f32 %v555, 0.0
      %v684 = vmax.f32 %v556, 0.0
      %v685 = vmax.f32 %v557, 0.0
      %v686 = vmax.f32 %v558, 0.0
      %v687 = vmax.f32 %v559, 0.0
      %v688 = vmax.f32 %v560, 0.0
      %v689 = vmax.f32 %v561, 0.0
      %v690 = vmax.f32 %v562, 0.0
      %v691 = vmax.f32 %v563, 0.0
      %v692 = vmax.f32 %v564, 0.0
      %v693 = vmax.f32 %v565, 0.0
      %v694 = vmax.f32 %v566, 0.0
      %v695 = vmax.f32 %v567, 0.0
      %v696 = vmax.f32 %v568, 0.0
      %v697 = vmax.f32 %v569, 0.0
      %v698 = vmax.f32 %v570, 0.0
      %v699 = vmax.f32 %v571, 0.0
      %v700 = vmax.f32 %v572, 0.0
      %v701 = vmax.f32 %v573, 0.0
      %v702 = vmax.f32 %v574, 0.0
      %v703 = vmax.f32 %v575, 0.0
      %v704 = vmax.f32 %v576, 0.0
      %v705 = vmax.f32 %v577, 0.0
      %v706 = vmax.f32 %v578, 0.0
      %v707 = vmax.f32 %v579, 0.0
      %v708 = vmax.f32 %v580, 0.0
      %v709 = vmax.f32 %v581, 0.0
      %v710 = vmax.f32 %v582, 0.0
      %v711 = vmax.f32 %v583, 0.0
      %v712 = vmax.f32 %v584, 0.0
      %v713 = vmax.f32 %v585, 0.0
      %v714 = vmax.f32 %v586, 0.0
      %v715 = vmax.f32 %v587, 0.0
      %v716 = vmax.f32 %v588, 0.0
      %v717 = vmax.f32 %v589, 0.0
      %v718 = vmax.f32 %v590, 0.0
      %v719 = vmax.f32 %v591, 0.0
      %v720 = vmax.f32 %v592, 0.0
      %v721 = vmax.f32 %v593, 0.0
      %v722 = vmax.f32 %v594, 0.0
      %v723 = vmax.f32 %v595, 0.0
      %v724 = vmax.f32 %v596, 0.0
      %v725 = vmax.f32 %v597, 0.0
      %v726 = vmax.f32 %v598, 0.0
      %v727 = vmax.f32 %v599, 0.0
      %v728 = vmax.f32 %v600, 0.0
      %v729 = vmax.f32 %v601, 0.0
      %v730 = vmax.f32 %v602, 0.0
      %v731 = vmax.f32 %v603, 0.0
      %v732 = vmax.f32 %v604, 0.0
      %v733 = vmax.f32 %v605, 0.0
      %v734 = vmax.f32 %v606, 0.0
      %v735 = vmax.f32 %v607, 0.0
      %v736 = vmax.f32 %v608, 0.0
      %v737 = vmax.f32 %v609, 0.0
      %v738 = vmax.f32 %v610, 0.0
      %v739 = vmax.f32 %v611, 0.0
      %v740 = vmax.f32 %v612, 0.0
      %v741 = vmax.f32 %v613, 0.0
      %v742 = vmax.f32 %v614, 0.0
      %v743 = vmax.f32 %v615, 0.0
      %v744 = vmax.f32 %v616, 0.0
      %v745 = vmax.f32 %v617, 0.0
      %v746 = vmax.f32 %v618, 0.0
      %v747 = vmax.f32 %v619, 0.0
      %v748 = vmax.f32 %v620, 0.0
      %v749 = vmax.f32 %v621, 0.0
      %v750 = vmax.f32 %v622, 0.0
      %v751 = vmax.f32 %v623, 0.0
      %v752 = vmax.f32 %v624, 0.0
      %v753 = vmax.f32 %v625, 0.0
      %v754 = vmax.f32 %v626, 0.0
      %v755 = vmax.f32 %v627, 0.0
      %v756 = vmax.f32 %v628, 0.0
      %v757 = vmax.f32 %v629, 0.0
      %v758 = vmax.f32 %v630, 0.0
      %v759 = vmax.f32 %v631, 0.0
      %v760 = vmax.f32 %v632, 0.0
      %v761 = vmax.f32 %v633, 0.0
      %v762 = vmax.f32 %v634, 0.0
      %v763 = vmax.f32 %v635, 0.0
      %v764 = vmax.f32 %v636, 0.0
      %v765 = vmax.f32 %v637, 0.0
      %v766 = vmin.f32 %v638, 255.0
      %v767 = vmin.f32 %v639, 255.0
      %v768 = vmin.f32 %v640, 255.0
      %v769 = vmin.f32 %v641, 255.0
      %v770 = vmin.f32 %v642, 255.0
      %v771 = vmin.f32 %v643, 255.0
      %v772 = vmin.f32 %v644, 255.0
      %v773 = vmin.f32 %v645, 255.0
      %v774 = vmin.f32 %v646, 255.0
      %v775 = vmin.f32 %v647, 255.0
      %v776 = vmin.f32 %v648, 255.0
      %v777 = vmin.f32 %v649, 255.0
      %v778 = vmin.f32 %v650, 255.0
      %v779 = vmin.f32 %v651, 255.0
      %v780 = vmin.f32 %v652, 255.0
      %v781 = vmin.f32 %v653, 255.0
      %v782 = vmin.f32 %v654, 255.0
      %v783 = vmin.f32 %v655, 255.0
      %v784 = vmin.f32 %v656, 255.0
      %v785 = vmin.f32 %v657, 255.0
      %v786 = vmin.f32 %v658, 255.0
      %v787 = vmin.f32 %v659, 255.0
      %v788 = vmin.f32 %v660, 255.0
      %v789 = vmin.f32 %v661, 255.0
      %v790 = vmin.f32 %v662, 255.0
      %v791 = vmin.f32 %v663, 255.0
      %v792 = vmin.f32 %v664, 255.0
      %v793 = vmin.f32 %v665, 255.0
      %v794 = vmin.f32 %v666, 255.0
      %v795 = vmin.f32 %v667, 255.0
      %v796 = vmin.f32 %v668, 255.0
      %v797 = vmin.f32 %v669, 255.0
      %v798 = vmin.f32 %v670, 255.0
      %v799 = vmin.f32 %v671, 255.0
      %v800 = vmin.f32 %v672, 255.0
      %v801 = vmin.f32 %v673, 255.0
      %v802 = vmin.f32 %v674, 255.0
      %v803 = vmin.f32 %v675, 255.0
      %v804 = vmin.f32 %v676, 255.0
      %v805 = vmin.f32 %v677, 255.0
      %v806 = vmin.f32 %v678, 255.0
      %v807 = vmin.f32 %v679, 255.0
      %v808 = vmin.f32 %v680, 255.0
      %v809 = vmin.f32 %v681, 255.0
      %v810 = vmin.f32 %v682, 255.0
      %v811 = vmin.f32 %v683, 255.0
      %v812 = vmin.f32 %v684, 255.0
      %v813 = vmin.f32 %v685, 255.0
      %v814 = vmin.f32 %v686, 255.0
      %v815 = vmin.f32 %v687, 255.0
      %v816 = vmin.f32 %v688, 255.0
      %v817 = vmin.f32 %v689, 255.0
      %v818 = vmin.f32 %v690, 255.0
      %v819 = vmin.f32 %v691, 255.0
      %v820 = vmin.f32 %v692, 255.0
      %v821 = vmin.f32 %v693, 255.0
      %v822 = vmin.f32 %v694, 255.0
      %v823 = vmin.f32 %v695, 255.0
      %v824 = vmin.f32 %v696, 255.0
      %v825 = vmin.f32 %v697, 255.0
      %v826 = vmin.f32 %v698, 255.0
      %v827 = vmin.f32 %v699, 255.0
      %v828 = vmin.f32 %v700, 255.0
      %v829 = vmin.f32 %v701, 255.0
      %v830 = vmin.f32 %v702, 255.0
      %v831 = vmin.f32 %v703, 255.0
      %v832 = vmin.f32 %v704, 255.0
      %v833 = vmin.f32 %v705, 255.0
      %v834 = vmin.f32 %v706, 255.0
      %v835 = vmin.f32 %v707, 255.0
      %v836 = vmin.f32 %v708, 255.0
      %v837 = vmin.f32 %v709, 255.0
      %v838 = vmin.f32 %v710, 255.0
      %v839 = vmin.f32 %v711, 255.0
      %v840 = vmin.f32 %v712, 255.0
      %v841 = vmin.f32 %v713, 255.0
      %v842 = vmin.f32 %v714, 255.0
      %v843 = vmin.f32 %v715, 255.0
      %v844 = vmin.f32 %v716, 255.0
      %v845 = vmin.f32 %v717, 255.0
      %v846 = vmin.f32 %v718, 255.0
      %v847 = vmin.f32 %v719, 255.0
      %v848 = vmin.f32 %v720, 255.0
      %v849 = vmin.f32 %v721, 255.0
      %v850 = vmin.f32 %v722, 255.0
      %v851 = vmin.f32 %v723, 255.0
      %v852 = vmin.f32 %v724, 255.0
      %v853 = vmin.f32 %v725, 255.0
      %v854 = vmin.f32 %v726, 255.0
      %v855 = vmin.f32 %v727, 255.0
      %v856 = vmin.f32 %v728, 255.0
      %v857 = vmin.f32 %v729, 255.0
      %v858 = vmin.f32 %v730, 255.0
      %v859 = vmin.f32 %v731, 255.0
      %v860 = vmin.f32 %v732, 255.0
      %v861 = vmin.f32 %v733, 255.0
      %v862 = vmin.f32 %v734, 255.0
      %v863 = vmin.f32 %v735, 255.0
      %v864 = vmin.f32 %v736, 255.0
      %v865 = vmin.f32 %v737, 255.0
      %v866 = vmin.f32 %v738, 255.0
      %v867 = vmin.f32 %v739, 255.0
      %v868 = vmin.f32 %v740, 255.0
      %v869 = vmin.f32 %v741, 255.0
      %v870 = vmin.f32 %v742, 255.0
      %v871 = vmin.f32 %v743, 255.0
      %v872 = vmin.f32 %v744, 255.0
      %v873 = vmin.f32 %v745, 255.0
      %v874 = vmin.f32 %v746, 255.0
      %v875 = vmin.f32 %v747, 255.0
      %v876 = vmin.f32 %v748, 255.0
      %v877 = vmin.f32 %v749, 255.0
      %v878 = vmin.f32 %v750, 255.0
      %v879 = vmin.f32 %v751, 255.0
      %v880 = vmin.f32 %v752, 255.0
      %v881 = vmin.f32 %v753, 255.0
      %v882 = vmin.f32 %v754, 255.0
      %v883 = vmin.f32 %v755, 255.0
      %v884 = vmin.f32 %v756, 255.0
      %v885 = vmin.f32 %v757, 255.0
      %v886 = vmin.f32 %v758, 255.0
      %v887 = vmin.f32 %v759, 255.0
      %v888 = vmin.f32 %v760, 255.0
      %v889 = vmin.f32 %v761, 255.0
      %v890 = vmin.f32 %v762, 255.0
      %v891 = vmin.f32 %v763, 255.0
      %v892 = vmin.f32 %v764, 255.0
      %v893 = vmin.f32 %v765, 255.0
      %v894 = vsub.f32 %v766, 64.0
      %v895 = vsub.f32 %v767, 64.0
      %v896 = vsub.f32 %v768, 64.0
      %v897 = vsub.f32 %v769, 64.0
      %v898 = vsub.f32 %v770, 64.0
      %v899 = vsub.f32 %v771, 64.0
      %v900 = vsub.f32 %v772, 64.0
      %v901 = vsub.f32 %v773, 64.0
      %v902 = vsub.f32 %v774, 64.0
      %v903 = vsub.f32 %v775, 64.0
      %v904 = vsub.f32 %v776, 64.0
      %v905 = vsub.f32 %v777, 64.0
      %v906 = vsub.f32 %v778, 64.0
      %v907 = vsub.f32 %v779, 64.0
      %v908 = vsub.f32 %v780, 64.0
      %v909 = vsub.f32 %v781, 64.0
      %v910 = vsub.f32 %v782, 64.0
      %v911 = vsub.f32 %v783, 64.0
      %v912 = vsub.f32 %v784, 64.0
      %v913 = vsub.f32 %v785, 64.0
      %v914 = vsub.f32 %v786, 64.0
      %v915 = vsub.f32 %v787, 64.0
      %v916 = vsub.f32 %v788, 64.0
      %v917 = vsub.f32 %v789, 64.0
      %v918 = vsub.f32 %v790, 64.0
      %v919 = vsub.f32 %v791, 64.0
      %v920 = vsub.f32 %v792, 64.0
      %v921 = vsub.f32 %v793, 64.0
      %v922 = vsub.f32 %v794, 64.0
      %v923 = vsub.f32 %v795, 64.0
      %v924 = vsub.f32 %v796, 64.0
      %v925 = vsub.f32 %v797, 64.0
      %v926 = vsub.f32 %v798, 64.0
      %v927 = vsub.f32 %v799, 64.0
      %v928 = vsub.f32 %v800, 64.0
      %v929 = vsub.f32 %v801, 64.0
      %v930 = vsub.f32 %v802, 64.0
      %v931 = vsub.f32 %v803, 64.0
      %v932 = vsub.f32 %v804, 64.0
      %v933 = vsub.f32 %v805, 64.0
      %v934 = vsub.f32 %v806, 64.0
      %v935 = vsub.f32 %v807, 64.0
      %v936 = vsub.f32 %v808, 64.0
      %v937 = vsub.f32 %v809, 64.0
      %v938 = vsub.f32 %v810, 64.0
      %v939 = vsub.f32 %v811, 64.0
      %v940 = vsub.f32 %v812, 64.0
      %v941 = vsub.f32 %v813, 64.0
      %v942 = vsub.f32 %v814, 64.0
      %v943 = vsub.f32 %v815, 64.0
      %v944 = vsub.f32 %v816, 64.0
      %v945 = vsub.f32 %v817, 64.0
      %v946 = vsub.f32 %v818, 64.0
      %v947 = vsub.f32 %v819, 64.0
      %v948 = vsub.f32 %v820, 64.0
      %v949 = vsub.f32 %v821, 64.0
      %v950 = vsub.f32 %v822, 64.0
      %v951 = vsub.f32 %v823, 64.0
      %v952 = vsub.f32 %v824, 64.0
      %v953 = vsub.f32 %v825, 64.0
      %v954 = vsub.f32 %v826, 64.0
      %v955 = vsub.f32 %v827, 64.0
      %v956 = vsub.f32 %v828, 64.0
      %v957 = vsub.f32 %v829, 64.0
      %v958 = vsub.f32 %v830, 64.0
      %v959 = vsub.f32 %v831, 64.0
      %v960 = vsub.f32 %v832, 64.0
      %v961 = vsub.f32 %v833, 64.0
      %v962 = vsub.f32 %v834, 64.0
      %v963 = vsub.f32 %v835, 64.0
      %v964 = vsub.f32 %v836, 64.0
      %v965 = vsub.f32 %v837, 64.0
      %v966 = vsub.f32 %v838, 64.0
      %v967 = vsub.f32 %v839, 64.0
      %v968 = vsub.f32 %v840, 64.0
      %v969 = vsub.f32 %v841, 64.0
      %v970 = vsub.f32 %v842, 64.0
      %v971 = vsub.f32 %v843, 64.0
      %v972 = vsub.f32 %v844, 64.0
      %v973 = vsub.f32 %v845, 64.0
      %v974 = vsub.f32 %v846, 64.0
      %v975 = vsub.f32 %v847, 64.0
      %v976 = vsub.f32 %v848, 64.0
      %v977 = vsub.f32 %v849, 64.0
      %v978 = vsub.f32 %v850, 64.0
      %v979 = vsub.f32 %v851, 64.0
      %v980 = vsub.f32 %v852, 64.0
      %v981 = vsub.f32 %v853, 64.0
      %v982 = vsub.f32 %v854, 64.0
      %v983 = vsub.f32 %v855, 64.0
      %v984 = vsub.f32 %v856, 64.0
      %v985 = vsub.f32 %v857, 64.0
      %v986 = vsub.f32 %v858, 64.0
      %v987 = vsub.f32 %v859, 64.0
      %v988 = vsub.f32 %v860, 64.0
      %v989 = vsub.f32 %v861, 64.0
      %v990 = vsub.f32 %v862, 64.0
      %v991 = vsub.f32 %v863, 64.0
      %v992 = vsub.f32 %v864, 64.0
      %v993 = vsub.f32 %v865, 64.0
      %v994 = vsub.f32 %v866, 64.0
      %v995 = vsub.f32 %v867, 64.0
      %v996 = vsub.f32 %v868, 64.0
      %v997 = vsub.f32 %v869, 64.0
      %v998 = vsub.f32 %v870, 64.0
      %v999 = vsub.f32 %v871, 64.0
      %v1000 = vsub.f32 %v872, 64.0
      %v1001 = vsub.f32 %v873, 64.0
      %v1002 = vsub.f32 %v874, 64.0
      %v1003 = vsub.f32 %v875, 64.0
      %v1004 = vsub.f32 %v876, 64.0
      %v1005 = vsub.f32 %v877, 64.0
      %v1006 = vsub.f32 %v878, 64.0
      %v1007 = vsub.f32 %v879, 64.0
      %v1008 = vsub.f32 %v880, 64.0
      %v1009 = vsub.f32 %v881, 64.0
      %v1010 = vsub.f32 %v882, 64.0
      %v1011 = vsub.f32 %v883, 64.0
      %v1012 = vsub.f32 %v884, 64.0
      %v1013 = vsub.f32 %v885, 64.0
      %v1014 = vsub.f32 %v886, 64.0
      %v1015 = vsub.f32 %v887, 64.0
      %v1016 = vsub.f32 %v888, 64.0
      %v1017 = vsub.f32 %v889, 64.0
      %v1018 = vsub.f32 %v890, 64.0
      %v1019 = vsub.f32 %v891, 64.0
      %v1020 = vsub.f32 %v892, 64.0
      %v1021 = vsub.f32 %v893, 64.0
      %v1022 = vmul.f32 %v894, 0.0472
      %v1023 = vmul.f32 %v895, 0.0472
      %v1024 = vmul.f32 %v896, 0.0472
      %v1025 = vmul.f32 %v897, 0.0472
      %v1026 = vmul.f32 %v898, 0.0472
      %v1027 = vmul.f32 %v899, 0.0472
      %v1028 = vmul.f32 %v900, 0.0472
      %v1029 = vmul.f32 %v901, 0.0472
      %v1030 = vmul.f32 %v902, 0.0472
      %v1031 = vmul.f32 %v903, 0.0472
      %v1032 = vmul.f32 %v904, 0.0472
      %v1033 = vmul.f32 %v905, 0.0472
      %v1034 = vmul.f32 %v906, 0.0472
      %v1035 = vmul.f32 %v907, 0.0472
      %v1036 = vmul.f32 %v908, 0.0472
      %v1037 = vmul.f32 %v909, 0.0472
      %v1038 = vmul.f32 %v910, 0.0472
      %v1039 = vmul.f32 %v911, 0.0472
      %v1040 = vmul.f32 %v912, 0.0472
      %v1041 = vmul.f32 %v913, 0.0472
      %v1042 = vmul.f32 %v914, 0.0472
      %v1043 = vmul.f32 %v915, 0.0472
      %v1044 = vmul.f32 %v916, 0.0472
      %v1045 = vmul.f32 %v917, 0.0472
      %v1046 = vmul.f32 %v918, 0.0472
      %v1047 = vmul.f32 %v919, 0.0472
      %v1048 = vmul.f32 %v920, 0.0472
      %v1049 = vmul.f32 %v921, 0.0472
      %v1050 = vmul.f32 %v922, 0.0472
      %v1051 = vmul.f32 %v923, 0.0472
      %v1052 = vmul.f32 %v924, 0.0472
      %v1053 = vmul.f32 %v925, 0.0472
      %v1054 = vmul.f32 %v926, 0.0472
      %v1055 = vmul.f32 %v927, 0.0472
      %v1056 = vmul.f32 %v928, 0.0472
      %v1057 = vmul.f32 %v929, 0.0472
      %v1058 = vmul.f32 %v930, 0.0472
      %v1059 = vmul.f32 %v931, 0.0472
      %v1060 = vmul.f32 %v932, 0.0472
      %v1061 = vmul.f32 %v933, 0.0472
      %v1062 = vmul.f32 %v934, 0.0472
      %v1063 = vmul.f32 %v935, 0.0472
      %v1064 = vmul.f32 %v936, 0.0472
      %v1065 = vmul.f32 %v937, 0.0472
      %v1066 = vmul.f32 %v938, 0.0472
      %v1067 = vmul.f32 %v939, 0.0472
      %v1068 = vmul.f32 %v940, 0.0472
      %v1069 = vmul.f32 %v941, 0.0472
      %v1070 = vmul.f32 %v942, 0.0472
      %v1071 = vmul.f32 %v943, 0.0472
      %v1072 = vmul.f32 %v944, 0.0472
      %v1073 = vmul.f32 %v945, 0.0472
      %v1074 = vmul.f32 %v946, 0.0472
      %v1075 = vmul.f32 %v947, 0.0472
      %v1076 = vmul.f32 %v948, 0.0472
      %v1077 = vmul.f32 %v949, 0.0472
      %v1078 = vmul.f32 %v950, 0.0472
      %v1079 = vmul.f32 %v951, 0.0472
      %v1080 = vmul.f32 %v952, 0.0472
      %v1081 = vmul.f32 %v953, 0.0472
      %v1082 = vmul.f32 %v954, 0.0472
      %v1083 = vmul.f32 %v955, 0.0472
      %v1084 = vmul.f32 %v956, 0.0472
      %v1085 = vmul.f32 %v957, 0.0472
      %v1086 = vmul.f32 %v958, 0.0472
      %v1087 = vmul.f32 %v959, 0.0472
      %v1088 = vmul.f32 %v960, 0.0472
      %v1089 = vmul.f32 %v961, 0.0472
      %v1090 = vmul.f32 %v962, 0.0472
      %v1091 = vmul.f32 %v963, 0.0472
      %v1092 = vmul.f32 %v964, 0.0472
      %v1093 = vmul.f32 %v965, 0.0472
      %v1094 = vmul.f32 %v966, 0.0472
      %v1095 = vmul.f32 %v967, 0.0472
      %v1096 = vmul.f32 %v968, 0.0472
      %v1097 = vmul.f32 %v969, 0.0472
      %v1098 = vmul.f32 %v970, 0.0472
      %v1099 = vmul.f32 %v971, 0.0472
      %v1100 = vmul.f32 %v972, 0.0472
      %v1101 = vmul.f32 %v973, 0.0472
      %v1102 = vmul.f32 %v974, 0.0472
      %v1103 = vmul.f32 %v975, 0.0472
      %v1104 = vmul.f32 %v976, 0.0472
      %v1105 = vmul.f32 %v977, 0.0472
      %v1106 = vmul.f32 %v978, 0.0472
      %v1107 = vmul.f32 %v979, 0.0472
      %v1108 = vmul.f32 %v980, 0.0472
      %v1109 = vmul.f32 %v981, 0.0472
      %v1110 = vmul.f32 %v982, 0.0472
      %v1111 = vmul.f32 %v983, 0.0472
      %v1112 = vmul.f32 %v984, 0.0472
      %v1113 = vmul.f32 %v985, 0.0472
      %v1114 = vmul.f32 %v986, 0.0472
      %v1115 = vmul.f32 %v987, 0.0472
      %v1116 = vmul.f32 %v988, 0.0472
      %v1117 = vmul.f32 %v989, 0.0472
      %v1118 = vmul.f32 %v990, 0.0472
      %v1119 = vmul.f32 %v991, 0.0472
      %v1120 = vmul.f32 %v992, 0.0472
      %v1121 = vmul.f32 %v993, 0.0472
      %v1122 = vmul.f32 %v994, 0.0472
      %v1123 = vmul.f32 %v995, 0.0472
      %v1124 = vmul.f32 %v996, 0.0472
      %v1125 = vmul.f32 %v997, 0.0472
      %v1126 = vmul.f32 %v998, 0.0472
      %v1127 = vmul.f32 %v999, 0.0472
      %v1128 = vmul.f32 %v1000, 0.0472
      %v1129 = vmul.f32 %v1001, 0.0472
      %v1130 = vmul.f32 %v1002, 0.0472
      %v1131 = vmul.f32 %v1003, 0.0472
      %v1132 = vmul.f32 %v1004, 0.0472
      %v1133 = vmul.f32 %v1005, 0.0472
      %v1134 = vmul.f32 %v1006, 0.0472
      %v1135 = vmul.f32 %v1007, 0.0472
      %v1136 = vmul.f32 %v1008, 0.0472
      %v1137 = vmul.f32 %v1009, 0.0472
      %v1138 = vmul.f32 %v1010, 0.0472
      %v1139 = vmul.f32 %v1011, 0.0472
      %v1140 = vmul.f32 %v1012, 0.0472
      %v1141 = vmul.f32 %v1013, 0.0472
      %v1142 = vmul.f32 %v1014, 0.0472
      %v1143 = vmul.f32 %v1015, 0.0472
      %v1144 = vmul.f32 %v1016, 0.0472
      %v1145 = vmul.f32 %v1017, 0.0472
      %v1146 = vmul.f32 %v1018, 0.0472
      %v1147 = vmul.f32 %v1019, 0.0472
      %v1148 = vmul.f32 %v1020, 0.0472
      %v1149 = vmul.f32 %v1021, 0.0472
      %v1150 = vmax.f32 %v1022, 0.0
      %v1151 = vmax.f32 %v1023, 0.0
      %v1152 = vmax.f32 %v1024, 0.0
      %v1153 = vmax.f32 %v1025, 0.0
      %v1154 = vmax.f32 %v1026, 0.0
      %v1155 = vmax.f32 %v1027, 0.0
      %v1156 = vmax.f32 %v1028, 0.0
      %v1157 = vmax.f32 %v1029, 0.0
      %v1158 = vmax.f32 %v1030, 0.0
      %v1159 = vmax.f32 %v1031, 0.0
      %v1160 = vmax.f32 %v1032, 0.0
      %v1161 = vmax.f32 %v1033, 0.0
      %v1162 = vmax.f32 %v1034, 0.0
      %v1163 = vmax.f32 %v1035, 0.0
      %v1164 = vmax.f32 %v1036, 0.0
      %v1165 = vmax.f32 %v1037, 0.0
      %v1166 = vmax.f32 %v1038, 0.0
      %v1167 = vmax.f32 %v1039, 0.0
      %v1168 = vmax.f32 %v1040, 0.0
      %v1169 = vmax.f32 %v1041, 0.0
      %v1170 = vmax.f32 %v1042, 0.0
      %v1171 = vmax.f32 %v1043, 0.0
      %v1172 = vmax.f32 %v1044, 0.0
      %v1173 = vmax.f32 %v1045, 0.0
      %v1174 = vmax.f32 %v1046, 0.0
      %v1175 = vmax.f32 %v1047, 0.0
      %v1176 = vmax.f32 %v1048, 0.0
      %v1177 = vmax.f32 %v1049, 0.0
      %v1178 = vmax.f32 %v1050, 0.0
      %v1179 = vmax.f32 %v1051, 0.0
      %v1180 = vmax.f32 %v1052, 0.0
      %v1181 = vmax.f32 %v1053, 0.0
      %v1182 = vmax.f32 %v1054, 0.0
      %v1183 = vmax.f32 %v1055, 0.0
      %v1184 = vmax.f32 %v1056, 0.0
      %v1185 = vmax.f32 %v1057, 0.0
      %v1186 = vmax.f32 %v1058, 0.0
      %v1187 = vmax.f32 %v1059, 0.0
      %v1188 = vmax.f32 %v1060, 0.0
      %v1189 = vmax.f32 %v1061, 0.0
      %v1190 = vmax.f32 %v1062, 0.0
      %v1191 = vmax.f32 %v1063, 0.0
      %v1192 = vmax.f32 %v1064, 0.0
      %v1193 = vmax.f32 %v1065, 0.0
      %v1194 = vmax.f32 %v1066, 0.0
      %v1195 = vmax.f32 %v1067, 0.0
      %v1196 = vmax.f32 %v1068, 0.0
      %v1197 = vmax.f32 %v1069, 0.0
      %v1198 = vmax.f32 %v1070, 0.0
      %v1199 = vmax.f32 %v1071, 0.0
      %v1200 = vmax.f32 %v1072, 0.0
      %v1201 = vmax.f32 %v1073, 0.0
      %v1202 = vmax.f32 %v1074, 0.0
      %v1203 = vmax.f32 %v1075, 0.0
      %v1204 = vmax.f32 %v1076, 0.0
      %v1205 = vmax.f32 %v1077, 0.0
      %v1206 = vmax.f32 %v1078, 0.0
      %v1207 = vmax.f32 %v1079, 0.0
      %v1208 = vmax.f32 %v1080, 0.0
      %v1209 = vmax.f32 %v1081, 0.0
      %v1210 = vmax.f32 %v1082, 0.0
      %v1211 = vmax.f32 %v1083, 0.0
      %v1212 = vmax.f32 %v1084, 0.0
      %v1213 = vmax.f32 %v1085, 0.0
      %v1214 = vmax.f32 %v1086, 0.0
      %v1215 = vmax.f32 %v1087, 0.0
      %v1216 = vmax.f32 %v1088, 0.0
      %v1217 = vmax.f32 %v1089, 0.0
      %v1218 = vmax.f32 %v1090, 0.0
      %v1219 = vmax.f32 %v1091, 0.0
      %v1220 = vmax.f32 %v1092, 0.0
      %v1221 = vmax.f32 %v1093, 0.0
      %v1222 = vmax.f32 %v1094, 0.0
      %v1223 = vmax.f32 %v1095, 0.0
      %v1224 = vmax.f32 %v1096, 0.0
      %v1225 = vmax.f32 %v1097, 0.0
      %v1226 = vmax.f32 %v1098, 0.0
      %v1227 = vmax.f32 %v1099, 0.0
      %v1228 = vmax.f32 %v1100, 0.0
      %v1229 = vmax.f32 %v1101, 0.0
      %v1230 = vmax.f32 %v1102, 0.0
      %v1231 = vmax.f32 %v1103, 0.0
      %v1232 = vmax.f32 %v1104, 0.0
      %v1233 = vmax.f32 %v1105, 0.0
      %v1234 = vmax.f32 %v1106, 0.0
      %v1235 = vmax.f32 %v1107, 0.0
      %v1236 = vmax.f32 %v1108, 0.0
      %v1237 = vmax.f32 %v1109, 0.0
      %v1238 = vmax.f32 %v1110, 0.0
      %v1239 = vmax.f32 %v1111, 0.0
      %v1240 = vmax.f32 %v1112, 0.0
      %v1241 = vmax.f32 %v1113, 0.0
      %v1242 = vmax.f32 %v1114, 0.0
      %v1243 = vmax.f32 %v1115, 0.0
      %v1244 = vmax.f32 %v1116, 0.0
      %v1245 = vmax.f32 %v1117, 0.0
      %v1246 = vmax.f32 %v1118, 0.0
      %v1247 = vmax.f32 %v1119, 0.0
      %v1248 = vmax.f32 %v1120, 0.0
      %v1249 = vmax.f32 %v1121, 0.0
      %v1250 = vmax.f32 %v1122, 0.0
      %v1251 = vmax.f32 %v1123, 0.0
      %v1252 = vmax.f32 %v1124, 0.0
      %v1253 = vmax.f32 %v1125, 0.0
      %v1254 = vmax.f32 %v1126, 0.0
      %v1255 = vmax.f32 %v1127, 0.0
      %v1256 = vmax.f32 %v1128, 0.0
      %v1257 = vmax.f32 %v1129, 0.0
      %v1258 = vmax.f32 %v1130, 0.0
      %v1259 = vmax.f32 %v1131, 0.0
      %v1260 = vmax.f32 %v1132, 0.0
      %v1261 = vmax.f32 %v1133, 0.0
      %v1262 = vmax.f32 %v1134, 0.0
      %v1263 = vmax.f32 %v1135, 0.0
      %v1264 = vmax.f32 %v1136, 0.0
      %v1265 = vmax.f32 %v1137, 0.0
      %v1266 = vmax.f32 %v1138, 0.0
      %v1267 = vmax.f32 %v1139, 0.0
      %v1268 = vmax.f32 %v1140, 0.0
      %v1269 = vmax.f32 %v1141, 0.0
      %v1270 = vmax.f32 %v1142, 0.0
      %v1271 = vmax.f32 %v1143, 0.0
      %v1272 = vmax.f32 %v1144, 0.0
      %v1273 = vmax.f32 %v1145, 0.0
      %v1274 = vmax.f32 %v1146, 0.0
      %v1275 = vmax.f32 %v1147, 0.0
      %v1276 = vmax.f32 %v1148, 0.0
      %v1277 = vmax.f32 %v1149, 0.0
      %1278 = vst [vmem:[%s123] sm:$0xff] %v1150
      %1279 = vst [vmem:[%s123 + $0x8] sm:$0xff] %v1151
      %1280 = vst [vmem:[%s123 + $0x10] sm:$0xff] %v1152
      %1281 = vst [vmem:[%s123 + $0x18] sm:$0xff] %v1153
      %1282 = vst [vmem:[%s123 + $0x20] sm:$0xff] %v1154
      %1283 = vst [vmem:[%s123 + $0x28] sm:$0xff] %v1155
      %1284 = vst [vmem:[%s123 + $0x30] sm:$0xff] %v1156
      %1285 = vst [vmem:[%s123 + $0x38] sm:$0xff] %v1157
      %1286 = vst [vmem:[%s123 + $0x40] sm:$0xff] %v1158
      %1287 = vst [vmem:[%s123 + $0x48] sm:$0xff] %v1159
      %1288 = vst [vmem:[%s123 + $0x50] sm:$0xff] %v1160
      %1289 = vst [vmem:[%s123 + $0x58] sm:$0xff] %v1161
      %1290 = vst [vmem:[%s123 + $0x60] sm:$0xff] %v1162
      %1291 = vst [vmem:[%s123 + $0x68] sm:$0xff] %v1163
      %1292 = vst [vmem:[%s123 + $0x70] sm:$0xff] %v1164
      %1293 = vst [vmem:[%s123 + $0x78] sm:$0xff] %v1165
      %1294 = vst [vmem:[%s123 + $0x80] sm:$0xff] %v1166
      %1295 = vst [vmem:[%s123 + $0x88] sm:$0xff] %v1167
      %1296 = vst [vmem:[%s123 + $0x90] sm:$0xff] %v1168
      %1297 = vst [vmem:[%s123 + $0x98] sm:$0xff] %v1169
      %1298 = vst [vmem:[%s123 + $0xa0] sm:$0xff] %v1170
      %1299 = vst [vmem:[%s123 + $0xa8] sm:$0xff] %v1171
      %1300 = vst [vmem:[%s123 + $0xb0] sm:$0xff] %v1172
      %1301 = vst [vmem:[%s123 + $0xb8] sm:$0xff] %v1173
      %1302 = vst [vmem:[%s123 + $0xc0] sm:$0xff] %v1174
      %1303 = vst [vmem:[%s123 + $0xc8] sm:$0xff] %v1175
      %1304 = vst [vmem:[%s123 + $0xd0] sm:$0xff] %v1176
      %1305 = vst [vmem:[%s123 + $0xd8] sm:$0xff] %v1177
      %1306 = vst [vmem:[%s123 + $0xe0] sm:$0xff] %v1178
      %1307 = vst [vmem:[%s123 + $0xe8] sm:$0xff] %v1179
      %1308 = vst [vmem:[%s123 + $0xf0] sm:$0xff] %v1180
      %1309 = vst [vmem:[%s123 + $0xf8] sm:$0xff] %v1181
      %1310 = vst [vmem:[%s123 + $0x100] sm:$0xff] %v1182
      %1311 = vst [vmem:[%s123 + $0x108] sm:$0xff] %v1183
      %1312 = vst [vmem:[%s123 + $0x110] sm:$0xff] %v1184
      %1313 = vst [vmem:[%s123 + $0x118] sm:$0xff] %v1185
      %1314 = vst [vmem:[%s123 + $0x120] sm:$0xff] %v1186
      %1315 = vst [vmem:[%s123 + $0x128] sm:$0xff] %v1187
      %1316 = vst [vmem:[%s123 + $0x130] sm:$0xff] %v1188
      %1317 = vst [vmem:[%s123 + $0x138] sm:$0xff] %v1189
      %1318 = vst [vmem:[%s123 + $0x140] sm:$0xff] %v1190
      %1319 = vst [vmem:[%s123 + $0x148] sm:$0xff] %v1191
      %1320 = vst [vmem:[%s123 + $0x150] sm:$0xff] %v1192
      %1321 = vst [vmem:[%s123 + $0x158] sm:$0xff] %v1193
      %1322 = vst [vmem:[%s123 + $0x160] sm:$0xff] %v1194
      %1323 = vst [vmem:[%s123 + $0x168] sm:$0xff] %v1195
      %1324 = vst [vmem:[%s123 + $0x170] sm:$0xff] %v1196
      %1325 = vst [vmem:[%s123 + $0x178] sm:$0xff] %v1197
      %1326 = vst [vmem:[%s123 + $0x180] sm:$0xff] %v1198
      %1327 = vst [vmem:[%s123 + $0x188] sm:$0xff] %v1199
      %1328 = vst [vmem:[%s123 + $0x190] sm:$0xff] %v1200
      %1329 = vst [vmem:[%s123 + $0x198] sm:$0xff] %v1201
      %1330 = vst [vmem:[%s123 + $0x1a0] sm:$0xff] %v1202
      %1331 = vst [vmem:[%s123 + $0x1a8] sm:$0xff] %v1203
      %1332 = vst [vmem:[%s123 + $0x1b0] sm:$0xff] %v1204
      %1333 = vst [vmem:[%s123 + $0x1b8] sm:$0xff] %v1205
      %1334 = vst [vmem:[%s123 + $0x1c0] sm:$0xff] %v1206
      %1335 = vst [vmem:[%s123 + $0x1c8] sm:$0xff] %v1207
      %1336 = vst [vmem:[%s123 + $0x1d0] sm:$0xff] %v1208
      %1337 = vst [vmem:[%s123 + $0x1d8] sm:$0xff] %v1209
      %1338 = vst [vmem:[%s123 + $0x1e0] sm:$0xff] %v1210
      %1339 = vst [vmem:[%s123 + $0x1e8] sm:$0xff] %v1211
      %1340 = vst [vmem:[%s123 + $0x1f0] sm:$0xff] %v1212
      %1341 = vst [vmem:[%s123 + $0x1f8] sm:$0xff] %v1213
      %1342 = vst [vmem:[%s123 + $0x200] sm:$0xff] %v1214
      %1343 = vst [vmem:[%s123 + $0x208] sm:$0xff] %v1215
      %1344 = vst [vmem:[%s123 + $0x210] sm:$0xff] %v1216
      %1345 = vst [vmem:[%s123 + $0x218] sm:$0xff] %v1217
      %1346 = vst [vmem:[%s123 + $0x220] sm:$0xff] %v1218
      %1347 = vst [vmem:[%s123 + $0x228] sm:$0xff] %v1219
      %1348 = vst [vmem:[%s123 + $0x230] sm:$0xff] %v1220
      %1349 = vst [vmem:[%s123 + $0x238] sm:$0xff] %v1221
      %1350 = vst [vmem:[%s123 + $0x240] sm:$0xff] %v1222
      %1351 = vst [vmem:[%s123 + $0x248] sm:$0xff] %v1223
      %1352 = vst [vmem:[%s123 + $0x250] sm:$0xff] %v1224
      %1353 = vst [vmem:[%s123 + $0x258] sm:$0xff] %v1225
      %1354 = vst [vmem:[%s123 + $0x260] sm:$0xff] %v1226
      %1355 = vst [vmem:[%s123 + $0x268] sm:$0xff] %v1227
      %1356 = vst [vmem:[%s123 + $0x270] sm:$0xff] %v1228
      %1357 = vst [vmem:[%s123 + $0x278] sm:$0xff] %v1229
      %1358 = vst [vmem:[%s123 + $0x280] sm:$0xff] %v1230
      %1359 = vst [vmem:[%s123 + $0x288] sm:$0xff] %v1231
      %1360 = vst [vmem:[%s123 + $0x290] sm:$0xff] %v1232
      %1361 = vst [vmem:[%s123 + $0x298] sm:$0xff] %v1233
      %1362 = vst [vmem:[%s123 + $0x2a0] sm:$0xff] %v1234
      %1363 = vst [vmem:[%s123 + $0x2a8] sm:$0xff] %v1235
      %1364 = vst [vmem:[%s123 + $0x2b0] sm:$0xff] %v1236
      %1365 = vst [vmem:[%s123 + $0x2b8] sm:$0xff] %v1237
      %1366 = vst [vmem:[%s123 + $0x2c0] sm:$0xff] %v1238
      %1367 = vst [vmem:[%s123 + $0x2c8] sm:$0xff] %v1239
      %1368 = vst [vmem:[%s123 + $0x2d0] sm:$0xff] %v1240
      %1369 = vst [vmem:[%s123 + $0x2d8] sm:$0xff] %v1241
      %1370 = vst [vmem:[%s123 + $0x2e0] sm:$0xff] %v1242
      %1371 = vst [vmem:[%s123 + $0x2e8] sm:$0xff] %v1243
      %1372 = vst [vmem:[%s123 + $0x2f0] sm:$0xff] %v1244
      %1373 = vst [vmem:[%s123 + $0x2f8] sm:$0xff] %v1245
      %1374 = vst [vmem:[%s123 + $0x300] sm:$0xff] %v1246
      %1375 = vst [vmem:[%s123 + $0x308] sm:$0xff] %v1247
      %1376 = vst [vmem:[%s123 + $0x310] sm:$0xff] %v1248
      %1377 = vst [vmem:[%s123 + $0x318] sm:$0xff] %v1249
      %1378 = vst [vmem:[%s123 + $0x320] sm:$0xff] %v1250
      %1379 = vst [vmem:[%s123 + $0x328] sm:$0xff] %v1251
      %1380 = vst [vmem:[%s123 + $0x330] sm:$0xff] %v1252
      %1381 = vst [vmem:[%s123 + $0x338] sm:$0xff] %v1253
      %1382 = vst [vmem:[%s123 + $0x340] sm:$0xff] %v1254
      %1383 = vst [vmem:[%s123 + $0x348] sm:$0xff] %v1255
      %1384 = vst [vmem:[%s123 + $0x350] sm:$0xff] %v1256
      %1385 = vst [vmem:[%s123 + $0x358] sm:$0xff] %v1257
      %1386 = vst [vmem:[%s123 + $0x360] sm:$0xff] %v1258
      %1387 = vst [vmem:[%s123 + $0x368] sm:$0xff] %v1259
      %1388 = vst [vmem:[%s123 + $0x370] sm:$0xff] %v1260
      %1389 = vst [vmem:[%s123 + $0x378] sm:$0xff] %v1261
      %1390 = vst [vmem:[%s123 + $0x380] sm:$0xff] %v1262
      %1391 = vst [vmem:[%s123 + $0x388] sm:$0xff] %v1263
      %1392 = vst [vmem:[%s123 + $0x390] sm:$0xff] %v1264
      %1393 = vst [vmem:[%s123 + $0x398] sm:$0xff] %v1265
      %1394 = vst [vmem:[%s123 + $0x3a0] sm:$0xff] %v1266
      %1395 = vst [vmem:[%s123 + $0x3a8] sm:$0xff] %v1267
      %1396 = vst [vmem:[%s123 + $0x3b0] sm:$0xff] %v1268
      %1397 = vst [vmem:[%s123 + $0x3b8] sm:$0xff] %v1269
      %1398 = vst [vmem:[%s123 + $0x3c0] sm:$0xff] %v1270
      %1399 = vst [vmem:[%s123 + $0x3c8] sm:$0xff] %v1271
      %1400 = vst [vmem:[%s123 + $0x3d0] sm:$0xff] %v1272
      %1401 = vst [vmem:[%s123 + $0x3d8] sm:$0xff] %v1273
      %1402 = vst [vmem:[%s123 + $0x3e0] sm:$0xff] %v1274
      %1403 = vst [vmem:[%s123 + $0x3e8] sm:$0xff] %v1275
      %1404 = vst [vmem:[%s123 + $0x3f0] sm:$0xff] %v1276
      %1405 = vst [vmem:[%s123 + $0x3f8] sm:$0xff] %v1277
      %s1406 = smul.u32 16, %s12
      %p1407 = scmp.lt.s32.totalorder %s1406, 31
      %s1408 = scalar_select %p1407, %s1406, 31
      %s1409 = smul.addr %s1408, 8
      %s1410 = smul.addr %s1409, 8
      %s1411 = scalar_lea.vmem %s1, %s1410
      // Predicated region
      $region25: #{relu_op.1} parent=23 // pred_check
        %p1412 = pneg %p56
      $region26: #{relu_op.1} parent=23 // pred_check_branch
        %1414 = sbr.rel (%p1412) target = $region28
      $region27: #{relu_op.1} parent=23 // pred_region
        %s1415 = smul.u32 16, %s12
      $region28: #{relu_op.1} parent=23 // pred_fallthru
        _
    $region24: #{relu_op.1} parent=5 // pred_fallthru
      _
    %p1416 = scmp.le.s32.totalorder 2, %s7
    // Predicated region
    $region29: #{relu_op.1} parent=5 // pred_check
      %p1417 = pneg %p1416
    $region30: #{relu_op.1} parent=5 // pred_check_branch
      %1419 = sbr.rel (%p1417) target = $region32
    $region31: #{relu_op.1} parent=5 // pred_region
      %s1420 = ssub.s32 %s7, 2
      // Predicated region
      $region33: #{relu_op.1} parent=31 // pred_check
        %p1421 = pneg %p62
      $region34: #{relu_op.1} parent=31 // pred_check_branch
        %1423 = sbr.rel (%p1421) target = $region36
      $region35: #{relu_op.1} parent=31 // pred_region
        %s1424 = smul.u32 16, %s13
        %p1425 = scmp.lt.s32.totalorder %s1424, 31
        %s1426 = scalar_select %p1425, %s1424, 31
        %s1427 = smul.addr %s1426, 8
        %s1428 = smul.addr %s1427, 8
        %s1429 = scalar_lea.vmem %s1, %s1428
      $region36: #{relu_op.1} parent=31 // pred_fallthru
        _
    $region32: #{relu_op.1} parent=5 // pred_fallthru
      _
  $region6: #{relu_op.1} parent=0 // loop_footer
    %s11 = sadd.s32 1, %s7
  $region7: #{relu_op.1} parent=0 // loop_footer_branch
    %6 = sbr.rel target = $region3
  $region8: #{relu_op.1} parent=0 // loop_exit
    _

</llo_original>
